<compile_context>
chip_gen: v5e
topology: v5e:2x2
jax: 0.10.0
libtpu: 0.0.40
codegen_flags: <defaults>
</compile_context>

<pallas_src>
from functools import partial

import jax
import jax.numpy as jnp
from jax import lax
from jax.experimental import pallas as pl
from jax.experimental.pallas import tpu as pltpu

CONV_KERNEL = 3
CONV_STRIDE = 2
BN_EPS = 1e-5
VMEM_LIMIT = 32 * 1024 * 1024


def _round_up(n, m):
    return (n + m - 1) // m * m


# ----------------------------------------------------------------------------
# Conv2d (no bias) + BatchNorm2d (eval, folded) + ReLU as one kernel per layer.
# Input plane per batch: (Ho+1, 2*Wp*Cin) "super-rows" (two consecutive padded
# time rows packed along lanes), so the three time taps are static slices:
#   tap kh=0 -> rows 2*ho   = super-row[ho,  :wpc]
#   tap kh=1 -> rows 2*ho+1 = super-row[ho,  wpc:]
#   tap kh=2 -> rows 2*ho+2 = super-row[ho+1,:wpc]
# The kw / Cin / freq-stride structure lives in the block-sparse tap weights.
# ----------------------------------------------------------------------------
def _conv_bn_relu_kernel(x_ref, w0_ref, w1_ref, w2_ref, b_ref, o_ref, *, wpc):
    Ho = o_ref.shape[1]
    X = x_ref[0]                             # (Ho+1, 2*wpc) bf16
    x0 = X[0:Ho, 0:wpc]
    x1 = X[0:Ho, wpc:2 * wpc]
    x2 = X[1:Ho + 1, 0:wpc]
    acc = jnp.dot(x0, w0_ref[...], preferred_element_type=jnp.float32)
    acc += jnp.dot(x1, w1_ref[...], preferred_element_type=jnp.float32)
    acc += jnp.dot(x2, w2_ref[...], preferred_element_type=jnp.float32)
    acc += b_ref[...]                        # folded BN shift
    o_ref[0] = jnp.maximum(acc, 0.0).astype(o_ref.dtype)


def _build_tap_weights(w, scale, shift, Wp, Wo):
    # w: (3, 3, Cin, Cout).  Tap matrix kh: (Wp*Cin, Wo*Cout) with
    #   M[(wi*Cin+ci), (wo*Cout+co)] = w[kh, wi-2*wo, ci, co] * scale[co]  (else 0).
    k, _, Cin, Cout = w.shape
    ws = w * scale.reshape(1, 1, 1, Cout)                 # fold BN scale
    wo_idx = jnp.arange(Wo)
    taps = []
    for kh in range(k):
        m = jnp.zeros((Wp, Wo, Cin, Cout), jnp.float32)
        for kw in range(k):
            m = m.at[CONV_STRIDE * wo_idx + kw, wo_idx].set(ws[kh, kw])
        taps.append(m.transpose(0, 2, 1, 3)
                     .reshape(Wp * Cin, Wo * Cout).astype(jnp.bfloat16))
    bias = jnp.tile(shift, (Wo,)).reshape(1, Wo * Cout).astype(jnp.float32)
    return taps, bias


def conv_bn_relu_layer(x, w, gamma, beta, mean, var):
    # x: (B, H, W*Cin) bf16, freq-major (f, c) feature order.
    B, H, WC = x.shape
    Cin, Cout = w.shape[2], w.shape[3]
    W = WC // Cin
    Ho = (H - 1) // CONV_STRIDE + 1
    Wo = (W - 1) // CONV_STRIDE + 1
    Wp = W + 2
    wpc = Wp * Cin

    scale = gamma / jnp.sqrt(var + BN_EPS)
    shift = beta - mean * scale
    taps, bias = _build_tap_weights(w, scale, shift, Wp, Wo)

    # Zero-pad freq by Cin on each side, time rows up to 2*Ho+2, pack super-rows.
    xp = jnp.pad(x, ((0, 0), (1, 2 * Ho + 1 - H), (Cin, Cin)))
    xsr = xp.reshape(B, Ho + 1, 2 * wpc)

    kernel = partial(_conv_bn_relu_kernel, wpc=wpc)
    out = pl.pallas_call(
        kernel,
        out_shape=jax.ShapeDtypeStruct((B, Ho, Wo * Cout), jnp.bfloat16),
        grid=(B,),
        in_specs=[
            pl.BlockSpec((1, Ho + 1, 2 * wpc), lambda b: (b, 0, 0)),
            pl.BlockSpec((wpc, Wo * Cout), lambda b: (0, 0)),
            pl.BlockSpec((wpc, Wo * Cout), lambda b: (0, 0)),
            pl.BlockSpec((wpc, Wo * Cout), lambda b: (0, 0)),
            pl.BlockSpec((1, Wo * Cout), lambda b: (0, 0)),
        ],
        out_specs=pl.BlockSpec((1, Ho, Wo * Cout), lambda b: (b, 0, 0)),
        compiler_params=pltpu.CompilerParams(
            dimension_semantics=("parallel",),
            vmem_limit_bytes=VMEM_LIMIT),
    )(xsr, taps[0], taps[1], taps[2], bias)
    return out                                             # (B, Ho, Wo*Cout) bf16


# ----------------------------------------------------------------------------
# Tiled GEMM + bias (bf16 out): precompute all GRU input-hidden projections.
# ----------------------------------------------------------------------------
def _matmul_bias_kernel(x_ref, w_ref, b_ref, o_ref):
    y = jnp.dot(x_ref[...], w_ref[...], preferred_element_type=jnp.float32)
    o_ref[...] = (y + b_ref[...]).astype(o_ref.dtype)


def matmul_bias(x, w, b, *, tm_max=1024):
    M, K = x.shape
    N = w.shape[1]
    TM = min(tm_max, _round_up(M, 8))
    M_pad = _round_up(M, TM)
    if M_pad != M:
        x = jnp.pad(x, ((0, M_pad - M), (0, 0)))
    out = pl.pallas_call(
        _matmul_bias_kernel,
        out_shape=jax.ShapeDtypeStruct((M_pad, N), jnp.bfloat16),
        grid=(M_pad // TM,),
        in_specs=[
            pl.BlockSpec((TM, K), lambda i: (i, 0)),
            pl.BlockSpec((K, N), lambda i: (0, 0)),
            pl.BlockSpec((1, N), lambda i: (0, 0)),
        ],
        out_specs=pl.BlockSpec((TM, N), lambda i: (i, 0)),
        compiler_params=pltpu.CompilerParams(
            dimension_semantics=("parallel",),
            vmem_limit_bytes=VMEM_LIMIT),
    )(x.astype(jnp.bfloat16), w.astype(jnp.bfloat16), b.astype(jnp.float32))
    return out[:M]


# ----------------------------------------------------------------------------
# GRU recurrence (single layer).  gi precomputed; hidden state persistent in
# VMEM scratch; static-trip-count chunks (full vs. tail under pl.when); one
# concatenated (B,H)@(H,3H) f32 matmul per step.  Gate order [r, z, n].
# ----------------------------------------------------------------------------
def _gru_scan_kernel(gi_ref, whh_ref, bhh_ref, o_ref, h_scr, *, t_chunk, t_tail):
    c = pl.program_id(0)
    nc = pl.num_programs(0)

    @pl.when(c == 0)
    def _init():
        h_scr[...] = jnp.zeros_like(h_scr)

    whh = whh_ref[...]                  # loaded once per chunk
    bhh = bhh_ref[...]
    H = whh.shape[0]

    def step(tt, h):
        gi = gi_ref[tt].astype(jnp.float32)                        # (B, 3H)
        gh = jnp.dot(h, whh, preferred_element_type=jnp.float32) + bhh
        r = jax.nn.sigmoid(gi[:, 0:H] + gh[:, 0:H])
        z = jax.nn.sigmoid(gi[:, H:2 * H] + gh[:, H:2 * H])
        n = jnp.tanh(gi[:, 2 * H:3 * H] + r * gh[:, 2 * H:3 * H])
        return (1.0 - z) * n + z * h

    @pl.when(c != nc - 1)
    def _full():
        h_scr[...] = lax.fori_loop(0, t_chunk, step, h_scr[...], unroll=True)

    @pl.when(c == nc - 1)
    def _tail():
        h_scr[...] = lax.fori_loop(0, t_tail, step, h_scr[...], unroll=True)

    @pl.when(c == nc - 1)
    def _finalize():
        o_ref[...] = h_scr[...].astype(o_ref.dtype)


def gru_final_state(gi_tbg, whh, bhh, *, t_chunk=64):
    # gi_tbg: (T, B, 3H) bf16, time-major precomputed input projections.
    T, B, G3 = gi_tbg.shape
    H = whh.shape[0]
    tc = min(t_chunk, T)
    nc = pl.cdiv(T, tc)
    T_pad = nc * tc
    if T_pad != T:
        gi_tbg = jnp.pad(gi_tbg, ((0, T_pad - T), (0, 0), (0, 0)))
    t_tail = T - (nc - 1) * tc
    kernel = partial(_gru_scan_kernel, t_chunk=tc, t_tail=t_tail)
    return pl.pallas_call(
        kernel,
        out_shape=jax.ShapeDtypeStruct((B, H), jnp.float32),
        grid=(nc,),
        in_specs=[
            pl.BlockSpec((tc, B, G3), lambda c: (c, 0, 0)),
            pl.BlockSpec((H, G3), lambda c: (0, 0)),
            pl.BlockSpec((1, G3), lambda c: (0, 0)),
        ],
        out_specs=pl.BlockSpec((B, H), lambda c: (0, 0)),
        scratch_shapes=[pltpu.VMEM((B, H), jnp.float32)],
        compiler_params=pltpu.CompilerParams(
            dimension_semantics=("arbitrary",),
            vmem_limit_bytes=VMEM_LIMIT),
    )(gi_tbg, whh.astype(jnp.float32), bhh.astype(jnp.float32))


# ----------------------------------------------------------------------------
# Parameter init (deterministic, synthetic, PyTorch-compatible layouts) + forward.
# ----------------------------------------------------------------------------
def init_params(key, idim, conv_chans_list, k, gru_units):
    convs = []
    cin = 1
    for cout in conv_chans_list:
        key, kw_, kg, kb, km, kv = jax.random.split(key, 6)
        convs.append(dict(
            w=0.1 * jax.random.normal(kw_, (k, k, cin, cout), jnp.float32),
            gamma=1.0 + 0.1 * jax.random.normal(kg, (cout,), jnp.float32),
            beta=0.1 * jax.random.normal(kb, (cout,), jnp.float32),
            mean=0.1 * jax.random.normal(km, (cout,), jnp.float32),
            var=1.0 + jnp.abs(jax.random.normal(kv, (cout,), jnp.float32)),
        ))
        cin = cout

    pad = (k - 1) // 2
    f = idim
    for _ in conv_chans_list:
        f = (f - k + 2 * pad) // CONV_STRIDE + 1
    gru_in = f * conv_chans_list[-1]

    key, k1, k2, k3, k4 = jax.random.split(key, 5)
    s = 1.0 / (gru_units ** 0.5)
    return dict(
        convs=convs,
        # PyTorch layouts: wih rows are channel-major (c*F + f), gate cols [r|z|n].
        wih=jax.random.uniform(k1, (gru_in, 3 * gru_units), jnp.float32, -s, s),
        whh=jax.random.uniform(k2, (gru_units, 3 * gru_units), jnp.float32, -s, s),
        bih=jax.random.uniform(k3, (1, 3 * gru_units), jnp.float32, -s, s),
        bhh=jax.random.uniform(k4, (1, 3 * gru_units), jnp.float32, -s, s),
    )


def reference_encoder_forward(params, speech):
    """speech: (B, idim, Lmax) -> reference embedding (B, gru_units, 1)."""
    B = speech.shape[0]
    # speech.transpose(1, 2).unsqueeze(1) (NCHW) == (B, time, freq, Cin=1) -> flat freq*Cin.
    x = jnp.transpose(speech, (0, 2, 1)).astype(jnp.bfloat16)     # (B, Lmax, idim)

    for layer in params["convs"]:
        x = conv_bn_relu_layer(x, layer["w"], layer["gamma"], layer["beta"],
                               layer["mean"], layer["var"])       # bf16, lane-dense

    _, T, FC = x.shape
    Cout = params["convs"][-1]["w"].shape[-1]
    F = FC // Cout
    H3 = params["whh"].shape[1]

    # PyTorch flattens (B,T,C,F)->(B,T,C*F) channel-major; our features are
    # freq-major (f,c): fold that permutation into the Wih rows (weight-side, cheap).
    wih = params["wih"].reshape(Cout, F, H3).transpose(1, 0, 2).reshape(FC, H3)

    # Time-major bf16 activations (cheaper than transposing the 3H-wide f32 gi),
    # then one tiled GEMM for all input-hidden projections, stored bf16.
    hs_t = jnp.transpose(x, (1, 0, 2)).reshape(T * B, FC)
    gi = matmul_bias(hs_t, wih, params["bih"]).reshape(T, B, H3)  # (T, B, 3H) bf16

    ref = gru_final_state(gi, params["whh"], params["bhh"])       # (B, gru_units) f32
    return ref[:, :, None]                                        # ref_embs[-1].unsqueeze(-1)


if __name__ == "__main__":
    # Small, consistent config: idim=16, Lmax=16, 3 conv layers (4, 4, 8),
    # kernel=3, stride=2, 1 GRU layer with 32 units.
    B, idim, Lmax = 2, 16, 16
    conv_chans = (4, 4, 8)
    gru_units = 32

    key = jax.random.PRNGKey(0)
    kx, kp = jax.random.split(key)
    speech = jax.random.normal(kx, (B, idim, Lmax), jnp.float32)
    params = init_params(kp, idim, conv_chans, CONV_KERNEL, gru_units)

    fwd = jax.jit(reference_encoder_forward)
    out = fwd(params, speech)
    out = jax.block_until_ready(out)
    assert out.shape == (B, gru_units, 1), out.shape
    assert bool(jnp.all(jnp.isfinite(out)))
    print("KERNEL_OK")
</pallas_src>

<mosaic_0001>
module attributes {stable_mosaic.version = 11 : i64} {
  func.func @_conv_bn_relu_kernel(%arg0: i32, %arg1: memref<1x9x36xbf16, #tpu.memory_space<vmem>>, %arg2: memref<18x32xbf16, #tpu.memory_space<vmem>>, %arg3: memref<18x32xbf16, #tpu.memory_space<vmem>>, %arg4: memref<18x32xbf16, #tpu.memory_space<vmem>>, %arg5: memref<1x32xf32, #tpu.memory_space<vmem>>, %arg6: memref<1x8x32xbf16, #tpu.memory_space<vmem>>) attributes {dimension_semantics = [#tpu.dimension_semantics<parallel>], iteration_bounds = array<i64: 2>, scalar_prefetch = 0 : i64, scratch_operands = 0 : i64, tpu.core_type = #tpu.core_type<tc>, window_params = [{transform_indices = @transform_0, window_bounds = array<i64: 1, 9, 36>}, {pipeline_mode = #tpu.pipeline_mode<synchronous>, transform_indices = @transform_1, window_bounds = array<i64: 18, 32>}, {pipeline_mode = #tpu.pipeline_mode<synchronous>, transform_indices = @transform_2, window_bounds = array<i64: 18, 32>}, {pipeline_mode = #tpu.pipeline_mode<synchronous>, transform_indices = @transform_3, window_bounds = array<i64: 18, 32>}, {pipeline_mode = #tpu.pipeline_mode<synchronous>, transform_indices = @transform_4, window_bounds = array<i64: 1, 32>}, {transform_indices = @transform_5, window_bounds = array<i64: 1, 8, 32>}]} {
    %c0 = arith.constant 0 : index
    %c0_0 = arith.constant 0 : index
    %c0_1 = arith.constant 0 : index
    %0 = vector.load %arg1[%c0, %c0_0, %c0_1] : memref<1x9x36xbf16, #tpu.memory_space<vmem>>, vector<1x9x36xbf16>
    %1 = vector.shape_cast %0 : vector<1x9x36xbf16> to vector<9x36xbf16>
    %2 = vector.extract_strided_slice %1 {offsets = [0, 0], sizes = [8, 18], strides = [1, 1]} : vector<9x36xbf16> to vector<8x18xbf16>
    %3 = vector.extract_strided_slice %1 {offsets = [0, 18], sizes = [8, 18], strides = [1, 1]} : vector<9x36xbf16> to vector<8x18xbf16>
    %4 = vector.extract_strided_slice %1 {offsets = [1, 0], sizes = [8, 18], strides = [1, 1]} : vector<9x36xbf16> to vector<8x18xbf16>
    %c0_2 = arith.constant 0 : index
    %c0_3 = arith.constant 0 : index
    %5 = vector.load %arg2[%c0_2, %c0_3] : memref<18x32xbf16, #tpu.memory_space<vmem>>, vector<18x32xbf16>
    %cst = arith.constant dense<0.000000e+00> : vector<8x32xf32>
    %6 = tpu.matmul %2, %5, %cst {dimension_numbers = #tpu.dot_dimension_numbers<[1], [0], [0], [1], [0, 0, 1, 1], [], []>} : vector<8x18xbf16>, vector<18x32xbf16>, vector<8x32xf32> -> vector<8x32xf32>
    %c0_4 = arith.constant 0 : index
    %c0_5 = arith.constant 0 : index
    %7 = vector.load %arg3[%c0_4, %c0_5] : memref<18x32xbf16, #tpu.memory_space<vmem>>, vector<18x32xbf16>
    %cst_6 = arith.constant dense<0.000000e+00> : vector<8x32xf32>
    %8 = tpu.matmul %3, %7, %cst_6 {dimension_numbers = #tpu.dot_dimension_numbers<[1], [0], [0], [1], [0, 0, 1, 1], [], []>} : vector<8x18xbf16>, vector<18x32xbf16>, vector<8x32xf32> -> vector<8x32xf32>
    %9 = arith.addf %6, %8 : vector<8x32xf32>
    %c0_7 = arith.constant 0 : index
    %c0_8 = arith.constant 0 : index
    %10 = vector.load %arg4[%c0_7, %c0_8] : memref<18x32xbf16, #tpu.memory_space<vmem>>, vector<18x32xbf16>
    %cst_9 = arith.constant dense<0.000000e+00> : vector<8x32xf32>
    %11 = tpu.matmul %4, %10, %cst_9 {dimension_numbers = #tpu.dot_dimension_numbers<[1], [0], [0], [1], [0, 0, 1, 1], [], []>} : vector<8x18xbf16>, vector<18x32xbf16>, vector<8x32xf32> -> vector<8x32xf32>
    %12 = arith.addf %9, %11 : vector<8x32xf32>
    %c0_10 = arith.constant 0 : index
    %c0_11 = arith.constant 0 : index
    %13 = vector.load %arg5[%c0_10, %c0_11] : memref<1x32xf32, #tpu.memory_space<vmem>>, vector<1x32xf32>
    %14 = vector.broadcast %13 : vector<1x32xf32> to vector<8x32xf32>
    %15 = arith.addf %12, %14 : vector<8x32xf32>
    %cst_12 = arith.constant 0.000000e+00 : f32
    %16 = vector.broadcast %cst_12 : f32 to vector<8x32xf32>
    %17 = arith.maximumf %15, %16 : vector<8x32xf32>
    %18 = arith.truncf %17 : vector<8x32xf32> to vector<8x32xbf16>
    %c0_13 = arith.constant 0 : index
    %c0_14 = arith.constant 0 : index
    %c0_15 = arith.constant 0 : index
    %19 = vector.load %arg6[%c0_13, %c0_14, %c0_15] : memref<1x8x32xbf16, #tpu.memory_space<vmem>>, vector<1x8x32xbf16>
    %20 = vector.shape_cast %19 : vector<1x8x32xbf16> to vector<8x32xbf16>
    %21 = vector.shape_cast %18 : vector<8x32xbf16> to vector<1x8x32xbf16>
    tpu.vector_store %arg6[%c0_13, %c0_14, %c0_15], %21 {strides = array<i32>} : memref<1x8x32xbf16, #tpu.memory_space<vmem>>, vector<1x8x32xbf16>,
    return
  }
  func.func @transform_0(%arg0: i32) -> (i32, i32, i32) {
    %c0_i32 = arith.constant 0 : i32
    %c0_i32_0 = arith.constant 0 : i32
    %c0_i32_1 = arith.constant 0 : i32
    return %arg0, %c0_i32, %c0_i32_0 : i32, i32, i32
  }
  func.func @transform_1(%arg0: i32) -> (i32, i32) {
    %c0_i32 = arith.constant 0 : i32
    %c0_i32_0 = arith.constant 0 : i32
    %c0_i32_1 = arith.constant 0 : i32
    return %c0_i32, %c0_i32_0 : i32, i32
  }
  func.func @transform_2(%arg0: i32) -> (i32, i32) {
    %c0_i32 = arith.constant 0 : i32
    %c0_i32_0 = arith.constant 0 : i32
    %c0_i32_1 = arith.constant 0 : i32
    return %c0_i32, %c0_i32_0 : i32, i32
  }
  func.func @transform_3(%arg0: i32) -> (i32, i32) {
    %c0_i32 = arith.constant 0 : i32
    %c0_i32_0 = arith.constant 0 : i32
    %c0_i32_1 = arith.constant 0 : i32
    return %c0_i32, %c0_i32_0 : i32, i32
  }
  func.func @transform_4(%arg0: i32) -> (i32, i32) {
    %c0_i32 = arith.constant 0 : i32
    %c0_i32_0 = arith.constant 0 : i32
    %c0_i32_1 = arith.constant 0 : i32
    return %c0_i32, %c0_i32_0 : i32, i32
  }
  func.func @transform_5(%arg0: i32) -> (i32, i32, i32) {
    %c0_i32 = arith.constant 0 : i32
    %c0_i32_0 = arith.constant 0 : i32
    %c0_i32_1 = arith.constant 0 : i32
    return %arg0, %c0_i32, %c0_i32_0 : i32, i32, i32
  }
}

module attributes {stable_mosaic.version = 11 : i64} {
  func.func @_conv_bn_relu_kernel(%arg0: i32, %arg1: memref<1x5x80xbf16, #tpu.memory_space<vmem>>, %arg2: memref<40x16xbf16, #tpu.memory_space<vmem>>, %arg3: memref<40x16xbf16, #tpu.memory_space<vmem>>, %arg4: memref<40x16xbf16, #tpu.memory_space<vmem>>, %arg5: memref<1x16xf32, #tpu.memory_space<vmem>>, %arg6: memref<1x4x16xbf16, #tpu.memory_space<vmem>>) attributes {dimension_semantics = [#tpu.dimension_semantics<parallel>], iteration_bounds = array<i64: 2>, scalar_prefetch = 0 : i64, scratch_operands = 0 : i64, tpu.core_type = #tpu.core_type<tc>, window_params = [{transform_indices = @transform_0, window_bounds = array<i64: 1, 5, 80>}, {pipeline_mode = #tpu.pipeline_mode<synchronous>, transform_indices = @transform_1, window_bounds = array<i64: 40, 16>}, {pipeline_mode = #tpu.pipeline_mode<synchronous>, transform_indices = @transform_2, window_bounds = array<i64: 40, 16>}, {pipeline_mode = #tpu.pipeline_mode<synchronous>, transform_indices = @transform_3, window_bounds = array<i64: 40, 16>}, {pipeline_mode = #tpu.pipeline_mode<synchronous>, transform_indices = @transform_4, window_bounds = array<i64: 1, 16>}, {transform_indices = @transform_5, window_bounds = array<i64: 1, 4, 16>}]} {
    %c0 = arith.constant 0 : index
    %c0_0 = arith.constant 0 : index
    %c0_1 = arith.constant 0 : index
    %0 = vector.load %arg1[%c0, %c0_0, %c0_1] : memref<1x5x80xbf16, #tpu.memory_space<vmem>>, vector<1x5x80xbf16>
    %1 = vector.shape_cast %0 : vector<1x5x80xbf16> to vector<5x80xbf16>
    %2 = vector.extract_strided_slice %1 {offsets = [0, 0], sizes = [4, 40], strides = [1, 1]} : vector<5x80xbf16> to vector<4x40xbf16>
    %3 = vector.extract_strided_slice %1 {offsets = [0, 40], sizes = [4, 40], strides = [1, 1]} : vector<5x80xbf16> to vector<4x40xbf16>
    %4 = vector.extract_strided_slice %1 {offsets = [1, 0], sizes = [4, 40], strides = [1, 1]} : vector<5x80xbf16> to vector<4x40xbf16>
    %c0_2 = arith.constant 0 : index
    %c0_3 = arith.constant 0 : index
    %5 = vector.load %arg2[%c0_2, %c0_3] : memref<40x16xbf16, #tpu.memory_space<vmem>>, vector<40x16xbf16>
    %cst = arith.constant dense<0.000000e+00> : vector<4x16xf32>
    %6 = tpu.matmul %2, %5, %cst {dimension_numbers = #tpu.dot_dimension_numbers<[1], [0], [0], [1], [0, 0, 1, 1], [], []>} : vector<4x40xbf16>, vector<40x16xbf16>, vector<4x16xf32> -> vector<4x16xf32>
    %c0_4 = arith.constant 0 : index
    %c0_5 = arith.constant 0 : index
    %7 = vector.load %arg3[%c0_4, %c0_5] : memref<40x16xbf16, #tpu.memory_space<vmem>>, vector<40x16xbf16>
    %cst_6 = arith.constant dense<0.000000e+00> : vector<4x16xf32>
    %8 = tpu.matmul %3, %7, %cst_6 {dimension_numbers = #tpu.dot_dimension_numbers<[1], [0], [0], [1], [0, 0, 1, 1], [], []>} : vector<4x40xbf16>, vector<40x16xbf16>, vector<4x16xf32> -> vector<4x16xf32>
    %9 = arith.addf %6, %8 : vector<4x16xf32>
    %c0_7 = arith.constant 0 : index
    %c0_8 = arith.constant 0 : index
    %10 = vector.load %arg4[%c0_7, %c0_8] : memref<40x16xbf16, #tpu.memory_space<vmem>>, vector<40x16xbf16>
    %cst_9 = arith.constant dense<0.000000e+00> : vector<4x16xf32>
    %11 = tpu.matmul %4, %10, %cst_9 {dimension_numbers = #tpu.dot_dimension_numbers<[1], [0], [0], [1], [0, 0, 1, 1], [], []>} : vector<4x40xbf16>, vector<40x16xbf16>, vector<4x16xf32> -> vector<4x16xf32>
    %12 = arith.addf %9, %11 : vector<4x16xf32>
    %c0_10 = arith.constant 0 : index
    %c0_11 = arith.constant 0 : index
    %13 = vector.load %arg5[%c0_10, %c0_11] : memref<1x16xf32, #tpu.memory_space<vmem>>, vector<1x16xf32>
    %14 = vector.broadcast %13 : vector<1x16xf32> to vector<4x16xf32>
    %15 = arith.addf %12, %14 : vector<4x16xf32>
    %cst_12 = arith.constant 0.000000e+00 : f32
    %16 = vector.broadcast %cst_12 : f32 to vector<4x16xf32>
    %17 = arith.maximumf %15, %16 : vector<4x16xf32>
    %18 = arith.truncf %17 : vector<4x16xf32> to vector<4x16xbf16>
    %c0_13 = arith.constant 0 : index
    %c0_14 = arith.constant 0 : index
    %c0_15 = arith.constant 0 : index
    %19 = vector.load %arg6[%c0_13, %c0_14, %c0_15] : memref<1x4x16xbf16, #tpu.memory_space<vmem>>, vector<1x4x16xbf16>
    %20 = vector.shape_cast %19 : vector<1x4x16xbf16> to vector<4x16xbf16>
    %21 = vector.shape_cast %18 : vector<4x16xbf16> to vector<1x4x16xbf16>
    tpu.vector_store %arg6[%c0_13, %c0_14, %c0_15], %21 {strides = array<i32>} : memref<1x4x16xbf16, #tpu.memory_space<vmem>>, vector<1x4x16xbf16>,
    return
  }
  func.func @transform_0(%arg0: i32) -> (i32, i32, i32) {
    %c0_i32 = arith.constant 0 : i32
    %c0_i32_0 = arith.constant 0 : i32
    %c0_i32_1 = arith.constant 0 : i32
    return %arg0, %c0_i32, %c0_i32_0 : i32, i32, i32
  }
  func.func @transform_1(%arg0: i32) -> (i32, i32) {
    %c0_i32 = arith.constant 0 : i32
    %c0_i32_0 = arith.constant 0 : i32
    %c0_i32_1 = arith.constant 0 : i32
    return %c0_i32, %c0_i32_0 : i32, i32
  }
  func.func @transform_2(%arg0: i32) -> (i32, i32) {
    %c0_i32 = arith.constant 0 : i32
    %c0_i32_0 = arith.constant 0 : i32
    %c0_i32_1 = arith.constant 0 : i32
    return %c0_i32, %c0_i32_0 : i32, i32
  }
  func.func @transform_3(%arg0: i32) -> (i32, i32) {
    %c0_i32 = arith.constant 0 : i32
    %c0_i32_0 = arith.constant 0 : i32
    %c0_i32_1 = arith.constant 0 : i32
    return %c0_i32, %c0_i32_0 : i32, i32
  }
  func.func @transform_4(%arg0: i32) -> (i32, i32) {
    %c0_i32 = arith.constant 0 : i32
    %c0_i32_0 = arith.constant 0 : i32
    %c0_i32_1 = arith.constant 0 : i32
    return %c0_i32, %c0_i32_0 : i32, i32
  }
  func.func @transform_5(%arg0: i32) -> (i32, i32, i32) {
    %c0_i32 = arith.constant 0 : i32
    %c0_i32_0 = arith.constant 0 : i32
    %c0_i32_1 = arith.constant 0 : i32
    return %arg0, %c0_i32, %c0_i32_0 : i32, i32, i32
  }
}

module attributes {stable_mosaic.version = 11 : i64} {
  func.func @_matmul_bias_kernel(%arg0: i32, %arg1: memref<8x16xbf16, #tpu.memory_space<vmem>>, %arg2: memref<16x96xbf16, #tpu.memory_space<vmem>>, %arg3: memref<1x96xf32, #tpu.memory_space<vmem>>, %arg4: memref<8x96xbf16, #tpu.memory_space<vmem>>) attributes {dimension_semantics = [#tpu.dimension_semantics<parallel>], iteration_bounds = array<i64: 1>, scalar_prefetch = 0 : i64, scratch_operands = 0 : i64, tpu.core_type = #tpu.core_type<tc>, window_params = [{transform_indices = @transform_0, window_bounds = array<i64: 8, 16>}, {pipeline_mode = #tpu.pipeline_mode<synchronous>, transform_indices = @transform_1, window_bounds = array<i64: 16, 96>}, {pipeline_mode = #tpu.pipeline_mode<synchronous>, transform_indices = @transform_2, window_bounds = array<i64: 1, 96>}, {transform_indices = @transform_3, window_bounds = array<i64: 8, 96>}]} {
    %c0 = arith.constant 0 : index
    %c0_0 = arith.constant 0 : index
    %0 = vector.load %arg1[%c0, %c0_0] : memref<8x16xbf16, #tpu.memory_space<vmem>>, vector<8x16xbf16>
    %c0_1 = arith.constant 0 : index
    %c0_2 = arith.constant 0 : index
    %1 = vector.load %arg2[%c0_1, %c0_2] : memref<16x96xbf16, #tpu.memory_space<vmem>>, vector<16x96xbf16>
    %cst = arith.constant dense<0.000000e+00> : vector<8x96xf32>
    %2 = tpu.matmul %0, %1, %cst {dimension_numbers = #tpu.dot_dimension_numbers<[1], [0], [0], [1], [0, 0, 1, 1], [], []>} : vector<8x16xbf16>, vector<16x96xbf16>, vector<8x96xf32> -> vector<8x96xf32>
    %c0_3 = arith.constant 0 : index
    %c0_4 = arith.constant 0 : index
    %3 = vector.load %arg3[%c0_3, %c0_4] : memref<1x96xf32, #tpu.memory_space<vmem>>, vector<1x96xf32>
    %4 = vector.broadcast %3 : vector<1x96xf32> to vector<8x96xf32>
    %5 = arith.addf %2, %4 : vector<8x96xf32>
    %6 = arith.truncf %5 : vector<8x96xf32> to vector<8x96xbf16>
    %c0_5 = arith.constant 0 : index
    %c0_6 = arith.constant 0 : index
    %7 = vector.load %arg4[%c0_5, %c0_6] : memref<8x96xbf16, #tpu.memory_space<vmem>>, vector<8x96xbf16>
    tpu.vector_store %arg4[%c0_5, %c0_6], %6 {strides = array<i32>} : memref<8x96xbf16, #tpu.memory_space<vmem>>, vector<8x96xbf16>,
    return
  }
  func.func @transform_0(%arg0: i32) -> (i32, i32) {
    %c0_i32 = arith.constant 0 : i32
    %c0_i32_0 = arith.constant 0 : i32
    return %arg0, %c0_i32 : i32, i32
  }
  func.func @transform_1(%arg0: i32) -> (i32, i32) {
    %c0_i32 = arith.constant 0 : i32
    %c0_i32_0 = arith.constant 0 : i32
    %c0_i32_1 = arith.constant 0 : i32
    return %c0_i32, %c0_i32_0 : i32, i32
  }
  func.func @transform_2(%arg0: i32) -> (i32, i32) {
    %c0_i32 = arith.constant 0 : i32
    %c0_i32_0 = arith.constant 0 : i32
    %c0_i32_1 = arith.constant 0 : i32
    return %c0_i32, %c0_i32_0 : i32, i32
  }
  func.func @transform_3(%arg0: i32) -> (i32, i32) {
    %c0_i32 = arith.constant 0 : i32
    %c0_i32_0 = arith.constant 0 : i32
    return %arg0, %c0_i32 : i32, i32
  }
}

module attributes {stable_mosaic.version = 11 : i64} {
  func.func @_conv_bn_relu_kernel(%arg0: i32, %arg1: memref<1x3x48xbf16, #tpu.memory_space<vmem>>, %arg2: memref<24x16xbf16, #tpu.memory_space<vmem>>, %arg3: memref<24x16xbf16, #tpu.memory_space<vmem>>, %arg4: memref<24x16xbf16, #tpu.memory_space<vmem>>, %arg5: memref<1x16xf32, #tpu.memory_space<vmem>>, %arg6: memref<1x2x16xbf16, #tpu.memory_space<vmem>>) attributes {dimension_semantics = [#tpu.dimension_semantics<parallel>], iteration_bounds = array<i64: 2>, scalar_prefetch = 0 : i64, scratch_operands = 0 : i64, tpu.core_type = #tpu.core_type<tc>, window_params = [{transform_indices = @transform_0, window_bounds = array<i64: 1, 3, 48>}, {pipeline_mode = #tpu.pipeline_mode<synchronous>, transform_indices = @transform_1, window_bounds = array<i64: 24, 16>}, {pipeline_mode = #tpu.pipeline_mode<synchronous>, transform_indices = @transform_2, window_bounds = array<i64: 24, 16>}, {pipeline_mode = #tpu.pipeline_mode<synchronous>, transform_indices = @transform_3, window_bounds = array<i64: 24, 16>}, {pipeline_mode = #tpu.pipeline_mode<synchronous>, transform_indices = @transform_4, window_bounds = array<i64: 1, 16>}, {transform_indices = @transform_5, window_bounds = array<i64: 1, 2, 16>}]} {
    %c0 = arith.constant 0 : index
    %c0_0 = arith.constant 0 : index
    %c0_1 = arith.constant 0 : index
    %0 = vector.load %arg1[%c0, %c0_0, %c0_1] : memref<1x3x48xbf16, #tpu.memory_space<vmem>>, vector<1x3x48xbf16>
    %1 = vector.shape_cast %0 : vector<1x3x48xbf16> to vector<3x48xbf16>
    %2 = vector.extract_strided_slice %1 {offsets = [0, 0], sizes = [2, 24], strides = [1, 1]} : vector<3x48xbf16> to vector<2x24xbf16>
    %3 = vector.extract_strided_slice %1 {offsets = [0, 24], sizes = [2, 24], strides = [1, 1]} : vector<3x48xbf16> to vector<2x24xbf16>
    %4 = vector.extract_strided_slice %1 {offsets = [1, 0], sizes = [2, 24], strides = [1, 1]} : vector<3x48xbf16> to vector<2x24xbf16>
    %c0_2 = arith.constant 0 : index
    %c0_3 = arith.constant 0 : index
    %5 = vector.load %arg2[%c0_2, %c0_3] : memref<24x16xbf16, #tpu.memory_space<vmem>>, vector<24x16xbf16>
    %cst = arith.constant dense<0.000000e+00> : vector<2x16xf32>
    %6 = tpu.matmul %2, %5, %cst {dimension_numbers = #tpu.dot_dimension_numbers<[1], [0], [0], [1], [0, 0, 1, 1], [], []>} : vector<2x24xbf16>, vector<24x16xbf16>, vector<2x16xf32> -> vector<2x16xf32>
    %c0_4 = arith.constant 0 : index
    %c0_5 = arith.constant 0 : index
    %7 = vector.load %arg3[%c0_4, %c0_5] : memref<24x16xbf16, #tpu.memory_space<vmem>>, vector<24x16xbf16>
    %cst_6 = arith.constant dense<0.000000e+00> : vector<2x16xf32>
    %8 = tpu.matmul %3, %7, %cst_6 {dimension_numbers = #tpu.dot_dimension_numbers<[1], [0], [0], [1], [0, 0, 1, 1], [], []>} : vector<2x24xbf16>, vector<24x16xbf16>, vector<2x16xf32> -> vector<2x16xf32>
    %9 = arith.addf %6, %8 : vector<2x16xf32>
    %c0_7 = arith.constant 0 : index
    %c0_8 = arith.constant 0 : index
    %10 = vector.load %arg4[%c0_7, %c0_8] : memref<24x16xbf16, #tpu.memory_space<vmem>>, vector<24x16xbf16>
    %cst_9 = arith.constant dense<0.000000e+00> : vector<2x16xf32>
    %11 = tpu.matmul %4, %10, %cst_9 {dimension_numbers = #tpu.dot_dimension_numbers<[1], [0], [0], [1], [0, 0, 1, 1], [], []>} : vector<2x24xbf16>, vector<24x16xbf16>, vector<2x16xf32> -> vector<2x16xf32>
    %12 = arith.addf %9, %11 : vector<2x16xf32>
    %c0_10 = arith.constant 0 : index
    %c0_11 = arith.constant 0 : index
    %13 = vector.load %arg5[%c0_10, %c0_11] : memref<1x16xf32, #tpu.memory_space<vmem>>, vector<1x16xf32>
    %14 = vector.broadcast %13 : vector<1x16xf32> to vector<2x16xf32>
    %15 = arith.addf %12, %14 : vector<2x16xf32>
    %cst_12 = arith.constant 0.000000e+00 : f32
    %16 = vector.broadcast %cst_12 : f32 to vector<2x16xf32>
    %17 = arith.maximumf %15, %16 : vector<2x16xf32>
    %18 = arith.truncf %17 : vector<2x16xf32> to vector<2x16xbf16>
    %c0_13 = arith.constant 0 : index
    %c0_14 = arith.constant 0 : index
    %c0_15 = arith.constant 0 : index
    %19 = vector.load %arg6[%c0_13, %c0_14, %c0_15] : memref<1x2x16xbf16, #tpu.memory_space<vmem>>, vector<1x2x16xbf16>
    %20 = vector.shape_cast %19 : vector<1x2x16xbf16> to vector<2x16xbf16>
    %21 = vector.shape_cast %18 : vector<2x16xbf16> to vector<1x2x16xbf16>
    tpu.vector_store %arg6[%c0_13, %c0_14, %c0_15], %21 {strides = array<i32>} : memref<1x2x16xbf16, #tpu.memory_space<vmem>>, vector<1x2x16xbf16>,
    return
  }
  func.func @transform_0(%arg0: i32) -> (i32, i32, i32) {
    %c0_i32 = arith.constant 0 : i32
    %c0_i32_0 = arith.constant 0 : i32
    %c0_i32_1 = arith.constant 0 : i32
    return %arg0, %c0_i32, %c0_i32_0 : i32, i32, i32
  }
  func.func @transform_1(%arg0: i32) -> (i32, i32) {
    %c0_i32 = arith.constant 0 : i32
    %c0_i32_0 = arith.constant 0 : i32
    %c0_i32_1 = arith.constant 0 : i32
    return %c0_i32, %c0_i32_0 : i32, i32
  }
  func.func @transform_2(%arg0: i32) -> (i32, i32) {
    %c0_i32 = arith.constant 0 : i32
    %c0_i32_0 = arith.constant 0 : i32
    %c0_i32_1 = arith.constant 0 : i32
    return %c0_i32, %c0_i32_0 : i32, i32
  }
  func.func @transform_3(%arg0: i32) -> (i32, i32) {
    %c0_i32 = arith.constant 0 : i32
    %c0_i32_0 = arith.constant 0 : i32
    %c0_i32_1 = arith.constant 0 : i32
    return %c0_i32, %c0_i32_0 : i32, i32
  }
  func.func @transform_4(%arg0: i32) -> (i32, i32) {
    %c0_i32 = arith.constant 0 : i32
    %c0_i32_0 = arith.constant 0 : i32
    %c0_i32_1 = arith.constant 0 : i32
    return %c0_i32, %c0_i32_0 : i32, i32
  }
  func.func @transform_5(%arg0: i32) -> (i32, i32, i32) {
    %c0_i32 = arith.constant 0 : i32
    %c0_i32_0 = arith.constant 0 : i32
    %c0_i32_1 = arith.constant 0 : i32
    return %arg0, %c0_i32, %c0_i32_0 : i32, i32, i32
  }
}

module attributes {stable_mosaic.version = 11 : i64} {
  func.func @_gru_scan_kernel(%arg0: i32, %arg1: memref<2x2x96xbf16, #tpu.memory_space<vmem>>, %arg2: memref<32x96xf32, #tpu.memory_space<vmem>>, %arg3: memref<1x96xf32, #tpu.memory_space<vmem>>, %arg4: memref<2x32xf32, #tpu.memory_space<vmem>>, %arg5: memref<2x32xf32, #tpu.memory_space<vmem>>) attributes {dimension_semantics = [#tpu.dimension_semantics<arbitrary>], iteration_bounds = array<i64: 1>, scalar_prefetch = 0 : i64, scratch_operands = 1 : i64, tpu.core_type = #tpu.core_type<tc>, window_params = [{transform_indices = @transform_0, window_bounds = array<i64: 2, 2, 96>}, {pipeline_mode = #tpu.pipeline_mode<synchronous>, transform_indices = @transform_1, window_bounds = array<i64: 32, 96>}, {pipeline_mode = #tpu.pipeline_mode<synchronous>, transform_indices = @transform_2, window_bounds = array<i64: 1, 96>}, {pipeline_mode = #tpu.pipeline_mode<synchronous>, transform_indices = @transform_3, window_bounds = array<i64: 2, 32>}]} {
    %c0_i32 = arith.constant 0 : i32
    %0 = arith.cmpi eq, %arg0, %c0_i32 : i32
    %1 = arith.extui %0 : i1 to i32
    %c0_i32_0 = arith.constant 0 : i32
    %2 = arith.cmpi ne, %1, %c0_i32_0 : i32
    scf.if %2 {
      %cst = arith.constant 0.000000e+00 : f32
      %14 = vector.broadcast %cst : f32 to vector<2x32xf32>
      %c0_10 = arith.constant 0 : index
      %c0_11 = arith.constant 0 : index
      %15 = vector.load %arg5[%c0_10, %c0_11] : memref<2x32xf32, #tpu.memory_space<vmem>>, vector<2x32xf32>
      tpu.vector_store %arg5[%c0_10, %c0_11], %14 {strides = array<i32>} : memref<2x32xf32, #tpu.memory_space<vmem>>, vector<2x32xf32>,
    } else {
    }
    %c0 = arith.constant 0 : index
    %c0_1 = arith.constant 0 : index
    %3 = vector.load %arg2[%c0, %c0_1] : memref<32x96xf32, #tpu.memory_space<vmem>>, vector<32x96xf32>
    %c0_2 = arith.constant 0 : index
    %c0_3 = arith.constant 0 : index
    %4 = vector.load %arg3[%c0_2, %c0_3] : memref<1x96xf32, #tpu.memory_space<vmem>>, vector<1x96xf32>
    %c0_i32_4 = arith.constant 0 : i32
    %5 = arith.cmpi ne, %arg0, %c0_i32_4 : i32
    %6 = arith.extui %5 : i1 to i32
    %c0_i32_5 = arith.constant 0 : i32
    %7 = arith.cmpi ne, %6, %c0_i32_5 : i32
    scf.if %7 {
      %c0_10 = arith.constant 0 : index
      %c0_11 = arith.constant 0 : index
      %14 = vector.load %arg5[%c0_10, %c0_11] : memref<2x32xf32, #tpu.memory_space<vmem>>, vector<2x32xf32>
      %c0_i32_12 = arith.constant 0 : i32
      %15 = arith.index_cast %c0_i32_12 : i32 to index
      %c0_13 = arith.constant 0 : index
      %c0_14 = arith.constant 0 : index
      %16 = vector.load %arg1[%15, %c0_13, %c0_14] : memref<2x2x96xbf16, #tpu.memory_space<vmem>>, vector<1x2x96xbf16>
      %17 = vector.shape_cast %16 : vector<1x2x96xbf16> to vector<2x96xbf16>
      %18 = arith.extf %17 : vector<2x96xbf16> to vector<2x96xf32>
      %cst = arith.constant dense<0.000000e+00> : vector<2x96xf32>
      %19 = tpu.matmul %14, %3, %cst {dimension_numbers = #tpu.dot_dimension_numbers<[1], [0], [0], [1], [0, 0, 1, 1], [], []>} : vector<2x32xf32>, vector<32x96xf32>, vector<2x96xf32> -> vector<2x96xf32>
      %20 = vector.broadcast %4 : vector<1x96xf32> to vector<2x96xf32>
      %21 = arith.addf %19, %20 : vector<2x96xf32>
      %22 = vector.extract_strided_slice %18 {offsets = [0, 0], sizes = [2, 32], strides = [1, 1]} : vector<2x96xf32> to vector<2x32xf32>
      %23 = vector.extract_strided_slice %21 {offsets = [0, 0], sizes = [2, 32], strides = [1, 1]} : vector<2x96xf32> to vector<2x32xf32>
      %24 = arith.addf %22, %23 : vector<2x32xf32>
      %25 = arith.negf %24 : vector<2x32xf32>
      %26 = math.exp %25 : vector<2x32xf32>
      %cst_15 = arith.constant 1.000000e+00 : f32
      %27 = vector.broadcast %cst_15 : f32 to vector<2x32xf32>
      %28 = arith.addf %27, %26 : vector<2x32xf32>
      %29 = arith.divf %27, %28 : vector<2x32xf32>
      %30 = vector.extract_strided_slice %18 {offsets = [0, 32], sizes = [2, 32], strides = [1, 1]} : vector<2x96xf32> to vector<2x32xf32>
      %31 = vector.extract_strided_slice %21 {offsets = [0, 32], sizes = [2, 32], strides = [1, 1]} : vector<2x96xf32> to vector<2x32xf32>
      %32 = arith.addf %30, %31 : vector<2x32xf32>
      %33 = arith.negf %32 : vector<2x32xf32>
      %34 = math.exp %33 : vector<2x32xf32>
      %cst_16 = arith.constant 1.000000e+00 : f32
      %35 = vector.broadcast %cst_16 : f32 to vector<2x32xf32>
      %36 = arith.addf %35, %34 : vector<2x32xf32>
      %37 = arith.divf %35, %36 : vector<2x32xf32>
      %38 = vector.extract_strided_slice %18 {offsets = [0, 64], sizes = [2, 32], strides = [1, 1]} : vector<2x96xf32> to vector<2x32xf32>
      %39 = vector.extract_strided_slice %21 {offsets = [0, 64], sizes = [2, 32], strides = [1, 1]} : vector<2x96xf32> to vector<2x32xf32>
      %40 = arith.mulf %29, %39 : vector<2x32xf32>
      %41 = arith.addf %38, %40 : vector<2x32xf32>
      %42 = math.tanh %41 : vector<2x32xf32>
      %cst_17 = arith.constant 1.000000e+00 : f32
      %43 = vector.broadcast %cst_17 : f32 to vector<2x32xf32>
      %44 = arith.subf %43, %37 : vector<2x32xf32>
      %45 = arith.mulf %44, %42 : vector<2x32xf32>
      %46 = arith.mulf %37, %14 : vector<2x32xf32>
      %47 = arith.addf %45, %46 : vector<2x32xf32>
      %c1_i32 = arith.constant 1 : i32
      %48 = arith.index_cast %c1_i32 : i32 to index
      %c0_18 = arith.constant 0 : index
      %c0_19 = arith.constant 0 : index
      %49 = vector.load %arg1[%48, %c0_18, %c0_19] : memref<2x2x96xbf16, #tpu.memory_space<vmem>>, vector<1x2x96xbf16>
      %50 = vector.shape_cast %49 : vector<1x2x96xbf16> to vector<2x96xbf16>
      %51 = arith.extf %50 : vector<2x96xbf16> to vector<2x96xf32>
      %cst_20 = arith.constant dense<0.000000e+00> : vector<2x96xf32>
      %52 = tpu.matmul %47, %3, %cst_20 {dimension_numbers = #tpu.dot_dimension_numbers<[1], [0], [0], [1], [0, 0, 1, 1], [], []>} : vector<2x32xf32>, vector<32x96xf32>, vector<2x96xf32> -> vector<2x96xf32>
      %53 = vector.broadcast %4 : vector<1x96xf32> to vector<2x96xf32>
      %54 = arith.addf %52, %53 : vector<2x96xf32>
      %55 = vector.extract_strided_slice %51 {offsets = [0, 0], sizes = [2, 32], strides = [1, 1]} : vector<2x96xf32> to vector<2x32xf32>
      %56 = vector.extract_strided_slice %54 {offsets = [0, 0], sizes = [2, 32], strides = [1, 1]} : vector<2x96xf32> to vector<2x32xf32>
      %57 = arith.addf %55, %56 : vector<2x32xf32>
      %58 = arith.negf %57 : vector<2x32xf32>
      %59 = math.exp %58 : vector<2x32xf32>
      %cst_21 = arith.constant 1.000000e+00 : f32
      %60 = vector.broadcast %cst_21 : f32 to vector<2x32xf32>
      %61 = arith.addf %60, %59 : vector<2x32xf32>
      %62 = arith.divf %60, %61 : vector<2x32xf32>
      %63 = vector.extract_strided_slice %51 {offsets = [0, 32], sizes = [2, 32], strides = [1, 1]} : vector<2x96xf32> to vector<2x32xf32>
      %64 = vector.extract_strided_slice %54 {offsets = [0, 32], sizes = [2, 32], strides = [1, 1]} : vector<2x96xf32> to vector<2x32xf32>
      %65 = arith.addf %63, %64 : vector<2x32xf32>
      %66 = arith.negf %65 : vector<2x32xf32>
      %67 = math.exp %66 : vector<2x32xf32>
      %cst_22 = arith.constant 1.000000e+00 : f32
      %68 = vector.broadcast %cst_22 : f32 to vector<2x32xf32>
      %69 = arith.addf %68, %67 : vector<2x32xf32>
      %70 = arith.divf %68, %69 : vector<2x32xf32>
      %71 = vector.extract_strided_slice %51 {offsets = [0, 64], sizes = [2, 32], strides = [1, 1]} : vector<2x96xf32> to vector<2x32xf32>
      %72 = vector.extract_strided_slice %54 {offsets = [0, 64], sizes = [2, 32], strides = [1, 1]} : vector<2x96xf32> to vector<2x32xf32>
      %73 = arith.mulf %62, %72 : vector<2x32xf32>
      %74 = arith.addf %71, %73 : vector<2x32xf32>
      %75 = math.tanh %74 : vector<2x32xf32>
      %cst_23 = arith.constant 1.000000e+00 : f32
      %76 = vector.broadcast %cst_23 : f32 to vector<2x32xf32>
      %77 = arith.subf %76, %70 : vector<2x32xf32>
      %78 = arith.mulf %77, %75 : vector<2x32xf32>
      %79 = arith.mulf %70, %47 : vector<2x32xf32>
      %80 = arith.addf %78, %79 : vector<2x32xf32>
      %c2_i32 = arith.constant 2 : i32
      %c0_24 = arith.constant 0 : index
      %c0_25 = arith.constant 0 : index
      %81 = vector.load %arg5[%c0_24, %c0_25] : memref<2x32xf32, #tpu.memory_space<vmem>>, vector<2x32xf32>
      tpu.vector_store %arg5[%c0_24, %c0_25], %80 {strides = array<i32>} : memref<2x32xf32, #tpu.memory_space<vmem>>, vector<2x32xf32>,
    } else {
    }
    %c0_i32_6 = arith.constant 0 : i32
    %8 = arith.cmpi eq, %arg0, %c0_i32_6 : i32
    %9 = arith.extui %8 : i1 to i32
    %c0_i32_7 = arith.constant 0 : i32
    %10 = arith.cmpi ne, %9, %c0_i32_7 : i32
    scf.if %10 {
      %c0_10 = arith.constant 0 : index
      %c0_11 = arith.constant 0 : index
      %14 = vector.load %arg5[%c0_10, %c0_11] : memref<2x32xf32, #tpu.memory_space<vmem>>, vector<2x32xf32>
      %c0_i32_12 = arith.constant 0 : i32
      %15 = arith.index_cast %c0_i32_12 : i32 to index
      %c0_13 = arith.constant 0 : index
      %c0_14 = arith.constant 0 : index
      %16 = vector.load %arg1[%15, %c0_13, %c0_14] : memref<2x2x96xbf16, #tpu.memory_space<vmem>>, vector<1x2x96xbf16>
      %17 = vector.shape_cast %16 : vector<1x2x96xbf16> to vector<2x96xbf16>
      %18 = arith.extf %17 : vector<2x96xbf16> to vector<2x96xf32>
      %cst = arith.constant dense<0.000000e+00> : vector<2x96xf32>
      %19 = tpu.matmul %14, %3, %cst {dimension_numbers = #tpu.dot_dimension_numbers<[1], [0], [0], [1], [0, 0, 1, 1], [], []>} : vector<2x32xf32>, vector<32x96xf32>, vector<2x96xf32> -> vector<2x96xf32>
      %20 = vector.broadcast %4 : vector<1x96xf32> to vector<2x96xf32>
      %21 = arith.addf %19, %20 : vector<2x96xf32>
      %22 = vector.extract_strided_slice %18 {offsets = [0, 0], sizes = [2, 32], strides = [1, 1]} : vector<2x96xf32> to vector<2x32xf32>
      %23 = vector.extract_strided_slice %21 {offsets = [0, 0], sizes = [2, 32], strides = [1, 1]} : vector<2x96xf32> to vector<2x32xf32>
      %24 = arith.addf %22, %23 : vector<2x32xf32>
      %25 = arith.negf %24 : vector<2x32xf32>
      %26 = math.exp %25 : vector<2x32xf32>
      %cst_15 = arith.constant 1.000000e+00 : f32
      %27 = vector.broadcast %cst_15 : f32 to vector<2x32xf32>
      %28 = arith.addf %27, %26 : vector<2x32xf32>
      %29 = arith.divf %27, %28 : vector<2x32xf32>
      %30 = vector.extract_strided_slice %18 {offsets = [0, 32], sizes = [2, 32], strides = [1, 1]} : vector<2x96xf32> to vector<2x32xf32>
      %31 = vector.extract_strided_slice %21 {offsets = [0, 32], sizes = [2, 32], strides = [1, 1]} : vector<2x96xf32> to vector<2x32xf32>
      %32 = arith.addf %30, %31 : vector<2x32xf32>
      %33 = arith.negf %32 : vector<2x32xf32>
      %34 = math.exp %33 : vector<2x32xf32>
      %cst_16 = arith.constant 1.000000e+00 : f32
      %35 = vector.broadcast %cst_16 : f32 to vector<2x32xf32>
      %36 = arith.addf %35, %34 : vector<2x32xf32>
      %37 = arith.divf %35, %36 : vector<2x32xf32>
      %38 = vector.extract_strided_slice %18 {offsets = [0, 64], sizes = [2, 32], strides = [1, 1]} : vector<2x96xf32> to vector<2x32xf32>
      %39 = vector.extract_strided_slice %21 {offsets = [0, 64], sizes = [2, 32], strides = [1, 1]} : vector<2x96xf32> to vector<2x32xf32>
      %40 = arith.mulf %29, %39 : vector<2x32xf32>
      %41 = arith.addf %38, %40 : vector<2x32xf32>
      %42 = math.tanh %41 : vector<2x32xf32>
      %cst_17 = arith.constant 1.000000e+00 : f32
      %43 = vector.broadcast %cst_17 : f32 to vector<2x32xf32>
      %44 = arith.subf %43, %37 : vector<2x32xf32>
      %45 = arith.mulf %44, %42 : vector<2x32xf32>
      %46 = arith.mulf %37, %14 : vector<2x32xf32>
      %47 = arith.addf %45, %46 : vector<2x32xf32>
      %c1_i32 = arith.constant 1 : i32
      %48 = arith.index_cast %c1_i32 : i32 to index
      %c0_18 = arith.constant 0 : index
      %c0_19 = arith.constant 0 : index
      %49 = vector.load %arg1[%48, %c0_18, %c0_19] : memref<2x2x96xbf16, #tpu.memory_space<vmem>>, vector<1x2x96xbf16>
      %50 = vector.shape_cast %49 : vector<1x2x96xbf16> to vector<2x96xbf16>
      %51 = arith.extf %50 : vector<2x96xbf16> to vector<2x96xf32>
      %cst_20 = arith.constant dense<0.000000e+00> : vector<2x96xf32>
      %52 = tpu.matmul %47, %3, %cst_20 {dimension_numbers = #tpu.dot_dimension_numbers<[1], [0], [0], [1], [0, 0, 1, 1], [], []>} : vector<2x32xf32>, vector<32x96xf32>, vector<2x96xf32> -> vector<2x96xf32>
      %53 = vector.broadcast %4 : vector<1x96xf32> to vector<2x96xf32>
      %54 = arith.addf %52, %53 : vector<2x96xf32>
      %55 = vector.extract_strided_slice %51 {offsets = [0, 0], sizes = [2, 32], strides = [1, 1]} : vector<2x96xf32> to vector<2x32xf32>
      %56 = vector.extract_strided_slice %54 {offsets = [0, 0], sizes = [2, 32], strides = [1, 1]} : vector<2x96xf32> to vector<2x32xf32>
      %57 = arith.addf %55, %56 : vector<2x32xf32>
      %58 = arith.negf %57 : vector<2x32xf32>
      %59 = math.exp %58 : vector<2x32xf32>
      %cst_21 = arith.constant 1.000000e+00 : f32
      %60 = vector.broadcast %cst_21 : f32 to vector<2x32xf32>
      %61 = arith.addf %60, %59 : vector<2x32xf32>
      %62 = arith.divf %60, %61 : vector<2x32xf32>
      %63 = vector.extract_strided_slice %51 {offsets = [0, 32], sizes = [2, 32], strides = [1, 1]} : vector<2x96xf32> to vector<2x32xf32>
      %64 = vector.extract_strided_slice %54 {offsets = [0, 32], sizes = [2, 32], strides = [1, 1]} : vector<2x96xf32> to vector<2x32xf32>
      %65 = arith.addf %63, %64 : vector<2x32xf32>
      %66 = arith.negf %65 : vector<2x32xf32>
      %67 = math.exp %66 : vector<2x32xf32>
      %cst_22 = arith.constant 1.000000e+00 : f32
      %68 = vector.broadcast %cst_22 : f32 to vector<2x32xf32>
      %69 = arith.addf %68, %67 : vector<2x32xf32>
      %70 = arith.divf %68, %69 : vector<2x32xf32>
      %71 = vector.extract_strided_slice %51 {offsets = [0, 64], sizes = [2, 32], strides = [1, 1]} : vector<2x96xf32> to vector<2x32xf32>
      %72 = vector.extract_strided_slice %54 {offsets = [0, 64], sizes = [2, 32], strides = [1, 1]} : vector<2x96xf32> to vector<2x32xf32>
      %73 = arith.mulf %62, %72 : vector<2x32xf32>
      %74 = arith.addf %71, %73 : vector<2x32xf32>
      %75 = math.tanh %74 : vector<2x32xf32>
      %cst_23 = arith.constant 1.000000e+00 : f32
      %76 = vector.broadcast %cst_23 : f32 to vector<2x32xf32>
      %77 = arith.subf %76, %70 : vector<2x32xf32>
      %78 = arith.mulf %77, %75 : vector<2x32xf32>
      %79 = arith.mulf %70, %47 : vector<2x32xf32>
      %80 = arith.addf %78, %79 : vector<2x32xf32>
      %c2_i32 = arith.constant 2 : i32
      %c0_24 = arith.constant 0 : index
      %c0_25 = arith.constant 0 : index
      %81 = vector.load %arg5[%c0_24, %c0_25] : memref<2x32xf32, #tpu.memory_space<vmem>>, vector<2x32xf32>
      tpu.vector_store %arg5[%c0_24, %c0_25], %80 {strides = array<i32>} : memref<2x32xf32, #tpu.memory_space<vmem>>, vector<2x32xf32>,
    } else {
    }
    %c0_i32_8 = arith.constant 0 : i32
    %11 = arith.cmpi eq, %arg0, %c0_i32_8 : i32
    %12 = arith.extui %11 : i1 to i32
    %c0_i32_9 = arith.constant 0 : i32
    %13 = arith.cmpi ne, %12, %c0_i32_9 : i32
    scf.if %13 {
      %c0_10 = arith.constant 0 : index
      %c0_11 = arith.constant 0 : index
      %14 = vector.load %arg5[%c0_10, %c0_11] : memref<2x32xf32, #tpu.memory_space<vmem>>, vector<2x32xf32>
      %c0_12 = arith.constant 0 : index
      %c0_13 = arith.constant 0 : index
      %15 = vector.load %arg4[%c0_12, %c0_13] : memref<2x32xf32, #tpu.memory_space<vmem>>, vector<2x32xf32>
      tpu.vector_store %arg4[%c0_12, %c0_13], %14 {strides = array<i32>} : memref<2x32xf32, #tpu.memory_space<vmem>>, vector<2x32xf32>,
    } else {
    }
    return
  }
  func.func @transform_0(%arg0: i32) -> (i32, i32, i32) {
    %c0_i32 = arith.constant 0 : i32
    %c0_i32_0 = arith.constant 0 : i32
    %c0_i32_1 = arith.constant 0 : i32
    return %arg0, %c0_i32, %c0_i32_0 : i32, i32, i32
  }
  func.func @transform_1(%arg0: i32) -> (i32, i32) {
    %c0_i32 = arith.constant 0 : i32
    %c0_i32_0 = arith.constant 0 : i32
    %c0_i32_1 = arith.constant 0 : i32
    return %c0_i32, %c0_i32_0 : i32, i32
  }
  func.func @transform_2(%arg0: i32) -> (i32, i32) {
    %c0_i32 = arith.constant 0 : i32
    %c0_i32_0 = arith.constant 0 : i32
    %c0_i32_1 = arith.constant 0 : i32
    return %c0_i32, %c0_i32_0 : i32, i32
  }
  func.func @transform_3(%arg0: i32) -> (i32, i32) {
    %c0_i32 = arith.constant 0 : i32
    %c0_i32_0 = arith.constant 0 : i32
    %c0_i32_1 = arith.constant 0 : i32
    return %c0_i32, %c0_i32_0 : i32, i32
  }
}

</mosaic_0001>

<llo_original>
// kernel: tile.19
$region0: #{tile.19}
  %s0 = inlined_call_operand.vmem [shape: f32[8,4], index: 0, kind: input, shape index: {}]
  %s1 = inlined_call_operand.vmem [shape: f32[1,32], index: 1, kind: output, shape index: {}]
  $region1: #{tile.19} parent=0
    #allocation0 [shape = 'u8[4096]{0}', space=vmem, size = 0x1000, scoped, tag = 'scoped mem for output reshape']
    %v2 = vld [vmem:[%s0] sm:$0x1]
    %vm3 = vcmask 31744
    %4 = vst.msk [vmem:[#allocation0] sm:$0x1] %vm3, %v2
    %s5 = scalar_lea.vmem %s0, 7
    %v6 = vld [vmem:[%s5] sm:$0x1]
    %7 = vrot.lane.b32.xlu0 %v6, 28
    %v8 = vpop.permute.xlu0 %7
    %vm9 = vcmask 261344
    %10 = vst.msk [vmem:[#allocation0] sm:$0x1] %vm9, %v8
    %s11 = scalar_lea.vmem %s0, 6
    %v12 = vld [vmem:[%s11] sm:$0x1]
    %13 = vrot.lane.b32.xlu0 %v12, 24
    %v14 = vpop.permute.xlu0 %13
    %vm15 = vcmask 228544
    %16 = vst.msk [vmem:[#allocation0] sm:$0x1] %vm15, %v14
    %s17 = scalar_lea.vmem %s0, 5
    %v18 = vld [vmem:[%s17] sm:$0x1]
    %19 = vrot.lane.b32.xlu0 %v18, 20
    %v20 = vpop.permute.xlu0 %19
    %vm21 = vcmask 195744
    %22 = vst.msk [vmem:[#allocation0] sm:$0x1] %vm21, %v20
    %s23 = scalar_lea.vmem %s0, 4
    %v24 = vld [vmem:[%s23] sm:$0x1]
    %25 = vrot.lane.b32.xlu0 %v24, 16
    %v26 = vpop.permute.xlu0 %25
    %vm27 = vcmask 162944
    %28 = vst.msk [vmem:[#allocation0] sm:$0x1] %vm27, %v26
    %s29 = scalar_lea.vmem %s0, 3
    %v30 = vld [vmem:[%s29] sm:$0x1]
    %31 = vrot.lane.b32.xlu0 %v30, 12
    %v32 = vpop.permute.xlu0 %31
    %vm33 = vcmask 130144
    %34 = vst.msk [vmem:[#allocation0] sm:$0x1] %vm33, %v32
    %s35 = scalar_lea.vmem %s0, 2
    %v36 = vld [vmem:[%s35] sm:$0x1]
    %37 = vrot.lane.b32.xlu0 %v36, 8
    %v38 = vpop.permute.xlu0 %37
    %vm39 = vcmask 97344
    %40 = vst.msk [vmem:[#allocation0] sm:$0x1] %vm39, %v38
    %s41 = scalar_lea.vmem %s0, 1
    %v42 = vld [vmem:[%s41] sm:$0x1]
    %43 = vrot.lane.b32.xlu0 %v42, 4
    %v44 = vpop.permute.xlu0 %43
    %vm45 = vcmask 64544
    %46 = vst.msk [vmem:[#allocation0] sm:$0x1] %vm45, %v44
    %s48 = ssub.s32 2, 1
    %v49 = vld [vmem:[#allocation0] sm:%s48]
    %s51 = ssub.s32 2, 1
    %52 = vst [vmem:[%s1] sm:%s51] %v49

// kernel: tile.23
$region0: #{tile.23}
  #allocation0 [shape = 's32[1]{0}', space=sflag, size = 0x4, scoped, tag = 'scoped memory for tile.23']
  %s0 = inlined_call_operand.vmem [shape: f32[4], index: 0, kind: input, shape index: {}]
  %s1 = inlined_call_operand.vmem [shape: f32[4,4], index: 1, kind: output, shape index: {}]
  // Predicated region
  $region2: #{tile.23} parent=0 // pred_check
    _
  $region3: #{tile.23} parent=0 // pred_check_branch
    %3 = sbr.rel (0) target = $region5
  $region4: #{tile.23} parent=0 // pred_region
    _
  $region5: #{tile.23} parent=0 // pred_fallthru
    _
  %v4 = vld [vmem:[%s0] ss:$0 sm:$0xff]
  %5 = vst [vmem:[%s1] sm:$0xf] %v4

// kernel: tile.24
$region0: #{tile.24}
  %s0 = inlined_call_operand.vmem [shape: f32[4,4], index: 0, kind: input, shape index: {}]
  %s1 = inlined_call_operand.vmem [shape: f32[1,16], index: 1, kind: output, shape index: {}]
  $region1: #{tile.24} parent=0
    #allocation0 [shape = 'u8[4096]{0}', space=vmem, size = 0x1000, scoped, tag = 'scoped mem for output reshape']
    #allocation1 [shape = 'u8[4096]{0}', space=vmem, size = 0x1000, scoped, tag = 'scoped mem for input reshape']
    %s3 = ssub.s32 16, 1
    %v4 = vld [vmem:[%s0] sm:%s3]
    %5 = vst [vmem:[#allocation1] sm:%s3] %v4
    %v6 = vld [vmem:[#allocation1] sm:$0x1]
    %vm7 = vcmask 31744
    %8 = vst.msk [vmem:[#allocation0] sm:$0x1] %vm7, %v6
    %s9 = scalar_lea.vmem [#allocation1], 3
    %v10 = vld [vmem:[%s9] sm:$0x1]
    %11 = vrot.lane.b32.xlu0 %v10, 12
    %v12 = vpop.permute.xlu0 %11
    %vm13 = vcmask 130144
    %14 = vst.msk [vmem:[#allocation0] sm:$0x1] %vm13, %v12
    %s15 = scalar_lea.vmem [#allocation1], 2
    %v16 = vld [vmem:[%s15] sm:$0x1]
    %17 = vrot.lane.b32.xlu0 %v16, 8
    %v18 = vpop.permute.xlu0 %17
    %vm19 = vcmask 97344
    %20 = vst.msk [vmem:[#allocation0] sm:$0x1] %vm19, %v18
    %s21 = scalar_lea.vmem [#allocation1], 1
    %v22 = vld [vmem:[%s21] sm:$0x1]
    %23 = vrot.lane.b32.xlu0 %v22, 4
    %v24 = vpop.permute.xlu0 %23
    %vm25 = vcmask 64544
    %26 = vst.msk [vmem:[#allocation0] sm:$0x1] %vm25, %v24
    %s28 = ssub.s32 2, 1
    %v29 = vld [vmem:[#allocation0] sm:%s28]
    %s31 = ssub.s32 2, 1
    %32 = vst [vmem:[%s1] sm:%s31] %v29

// kernel: tile.28
$region0: #{tile.28}
  #allocation0 [shape = 's32[1]{0}', space=sflag, size = 0x4, scoped, tag = 'scoped memory for tile.28']
  %s0 = inlined_call_operand.vmem [shape: f32[8], index: 0, kind: input, shape index: {}]
  %s1 = inlined_call_operand.vmem [shape: f32[2,8], index: 1, kind: output, shape index: {}]
  // Predicated region
  $region2: #{tile.28} parent=0 // pred_check
    _
  $region3: #{tile.28} parent=0 // pred_check_branch
    %3 = sbr.rel (0) target = $region5
  $region4: #{tile.28} parent=0 // pred_region
    _
  $region5: #{tile.28} parent=0 // pred_fallthru
    _
  %v4 = vld [vmem:[%s0] ss:$0 sm:$0xff]
  %5 = vst [vmem:[%s1] sm:$0x3] %v4

// kernel: tile.29
$region0: #{tile.29}
  %s0 = inlined_call_operand.vmem [shape: f32[2,8], index: 0, kind: input, shape index: {}]
  %s1 = inlined_call_operand.vmem [shape: f32[1,16], index: 1, kind: output, shape index: {}]
  $region1: #{tile.29} parent=0
    #allocation0 [shape = 'u8[4096]{0}', space=vmem, size = 0x1000, scoped, tag = 'scoped mem for output reshape']
    #allocation1 [shape = 'u8[4096]{0}', space=vmem, size = 0x1000, scoped, tag = 'scoped mem for input reshape']
    %s3 = ssub.s32 4, 1
    %v4 = vld [vmem:[%s0] sm:%s3]
    %5 = vst [vmem:[#allocation1] sm:%s3] %v4
    %v6 = vld [vmem:[#allocation1] sm:$0x1]
    %vm7 = vcmask 64512
    %8 = vst.msk [vmem:[#allocation0] sm:$0x1] %vm7, %v6
    %s9 = scalar_lea.vmem [#allocation1], 1
    %v10 = vld [vmem:[%s9] sm:$0x1]
    %11 = vrot.lane.b32.xlu0 %v10, 8
    %v12 = vpop.permute.xlu0 %11
    %vm13 = vcmask 130112
    %14 = vst.msk [vmem:[#allocation0] sm:$0x1] %vm13, %v12
    %s16 = ssub.s32 2, 1
    %v17 = vld [vmem:[#allocation0] sm:%s16]
    %s19 = ssub.s32 2, 1
    %20 = vst [vmem:[%s1] sm:%s19] %v17

// kernel: reference_encoder_forward.5
$region0: #{reference_encoder_forward.5}
  #allocation0 [shape = 'u32[]', space=smem, size = 0x4, offset = 0x4, fixed_abs, tag = 'smem constant byte address 0x4 - core index']
  #allocation1 [shape = 'u32[72,128]{1,0:T(1,128)}', space=vmem, size = 0x9000, scoped, tag = 'internal scratch']
  %s0 = inlined_call_operand.vmem [shape: bf16[2,9,36], index: 0, kind: input, shape index: {}]
  %s1 = inlined_call_operand.vmem [shape: bf16[18,32], index: 1, kind: input, shape index: {}]
  %s2 = inlined_call_operand.vmem [shape: bf16[18,32], index: 2, kind: input, shape index: {}]
  %s3 = inlined_call_operand.vmem [shape: bf16[18,32], index: 3, kind: input, shape index: {}]
  %s4 = inlined_call_operand.vmem [shape: f32[1,32], index: 4, kind: input, shape index: {}]
  %s5 = inlined_call_operand.vmem [shape: bf16[2,8,32], index: 5, kind: output, shape index: {}]
  %s6 = sld [smem:[#allocation0]]
  $region53: #{reference_encoder_forward.5} parent=0
    _
  %s8 = ssub.s32 1, %s6
  %s9 = scalar_select 0, %s8, %s6
  loop: start=0, step=1, limit=4
  $region2: #{reference_encoder_forward.5} parent=0 // loop_pre_header
    _
  $region3: #{reference_encoder_forward.5} parent=0 // loop_header
    %s11 = sphi 0, %s15
    %p12 = scmp.ge.s32.totalorder %s11, 4
    %s21 = sphi 0, %s23
    %s24 = sphi 0, %s21
    %s25 = sphi 0, %s24
    %s41 = sphi 0, %s25
    %s45 = sphi 0, %s45
    %s47 = sphi 0, %s45
    %s48 = sphi 0, %s47
    %s62 = sphi 0, %s48
    %s66 = sphi 0, %s66
    %s68 = sphi 0, %s66
    %s69 = sphi 0, %s68
    %s83 = sphi 0, %s69
    %s87 = sphi 0, %s87
    %s89 = sphi 0, %s87
    %s90 = sphi 0, %s89
    %s104 = sphi 0, %s90
    %s108 = sphi 0, %s108
    %s110 = sphi 0, %s108
    %s111 = sphi 0, %s110
    %s125 = sphi 0, %s111
    %s131 = sphi 0, %s133
    %s134 = sphi 0, %s131
    %s135 = sphi 0, %s134
    %s151 = sphi 0, %s135
  $region4: #{reference_encoder_forward.5} parent=0 // loop_header_branch
    %14 = sbr.rel (%p12) target = $region8
  $region5: #{reference_encoder_forward.5} parent=0 // loop_body
    %s16 = ssub.s32 %s11, 1
    %s17 = ssub.s32 %s11, 2
    %s18 = sadd.s32 %s11, 1
    %s19 = ssub.s32 %s11, %s18
    %p20 = scmp.eq.s32.totalorder %s19, 0
    %s22 = sadd.s32 %s21, 1
    %s23 = scalar_select %p20, %s21, %s22
    %p26 = pneg %p20
    %p27 = scmp.eq.s32.totalorder %s11, 1
    %p28 = por %p26, %p27
    %p29 = scmp.ne.s32.totalorder %s21, %s24
    %p30 = scmp.eq.s32.totalorder %s11, 0
    %p31 = por %p29, %p30
    %p32 = scmp.ne.s32.totalorder %s21, %s24
    %p33 = scmp.eq.s32.totalorder %s16, 1
    %p34 = por %p32, %p33
    %p35 = scmp.ne.s32.totalorder %s24, %s25
    %p36 = scmp.eq.s32.totalorder %s16, 0
    %p37 = por %p35, %p36
    %p38 = scmp.ne.s32.totalorder %s24, %s25
    %p39 = scmp.eq.s32.totalorder %s17, 1
    %p40 = por %p38, %p39
    %p42 = scmp.ne.s32.totalorder %s25, %s41
    %p43 = scmp.eq.s32.totalorder %s17, 0
    %p44 = por %p42, %p43
    %s46 = sadd.s32 %s45, 1
    %p49 = scmp.eq.s32.totalorder %s11, 1
    %p50 = scmp.ne.s32.totalorder %s45, %s47
    %p51 = scmp.eq.s32.totalorder %s11, 0
    %p52 = por %p50, %p51
    %p53 = scmp.ne.s32.totalorder %s45, %s47
    %p54 = scmp.eq.s32.totalorder %s16, 1
    %p55 = por %p53, %p54
    %p56 = scmp.ne.s32.totalorder %s47, %s48
    %p57 = scmp.eq.s32.totalorder %s16, 0
    %p58 = por %p56, %p57
    %p59 = scmp.ne.s32.totalorder %s47, %s48
    %p60 = scmp.eq.s32.totalorder %s17, 1
    %p61 = por %p59, %p60
    %p63 = scmp.ne.s32.totalorder %s48, %s62
    %p64 = scmp.eq.s32.totalorder %s17, 0
    %p65 = por %p63, %p64
    %s67 = sadd.s32 %s66, 1
    %p70 = scmp.eq.s32.totalorder %s11, 1
    %p71 = scmp.ne.s32.totalorder %s66, %s68
    %p72 = scmp.eq.s32.totalorder %s11, 0
    %p73 = por %p71, %p72
    %p74 = scmp.ne.s32.totalorder %s66, %s68
    %p75 = scmp.eq.s32.totalorder %s16, 1
    %p76 = por %p74, %p75
    %p77 = scmp.ne.s32.totalorder %s68, %s69
    %p78 = scmp.eq.s32.totalorder %s16, 0
    %p79 = por %p77, %p78
    %p80 = scmp.ne.s32.totalorder %s68, %s69
    %p81 = scmp.eq.s32.totalorder %s17, 1
    %p82 = por %p80, %p81
    %p84 = scmp.ne.s32.totalorder %s69, %s83
    %p85 = scmp.eq.s32.totalorder %s17, 0
    %p86 = por %p84, %p85
    %s88 = sadd.s32 %s87, 1
    %p91 = scmp.eq.s32.totalorder %s11, 1
    %p92 = scmp.ne.s32.totalorder %s87, %s89
    %p93 = scmp.eq.s32.totalorder %s11, 0
    %p94 = por %p92, %p93
    %p95 = scmp.ne.s32.totalorder %s87, %s89
    %p96 = scmp.eq.s32.totalorder %s16, 1
    %p97 = por %p95, %p96
    %p98 = scmp.ne.s32.totalorder %s89, %s90
    %p99 = scmp.eq.s32.totalorder %s16, 0
    %p100 = por %p98, %p99
    %p101 = scmp.ne.s32.totalorder %s89, %s90
    %p102 = scmp.eq.s32.totalorder %s17, 1
    %p103 = por %p101, %p102
    %p105 = scmp.ne.s32.totalorder %s90, %s104
    %p106 = scmp.eq.s32.totalorder %s17, 0
    %p107 = por %p105, %p106
    %s109 = sadd.s32 %s108, 1
    %p112 = scmp.eq.s32.totalorder %s11, 1
    %p113 = scmp.ne.s32.totalorder %s108, %s110
    %p114 = scmp.eq.s32.totalorder %s11, 0
    %p115 = por %p113, %p114
    %p116 = scmp.ne.s32.totalorder %s108, %s110
    %p117 = scmp.eq.s32.totalorder %s16, 1
    %p118 = por %p116, %p117
    %p119 = scmp.ne.s32.totalorder %s110, %s111
    %p120 = scmp.eq.s32.totalorder %s16, 0
    %p121 = por %p119, %p120
    %p122 = scmp.ne.s32.totalorder %s110, %s111
    %p123 = scmp.eq.s32.totalorder %s17, 1
    %p124 = por %p122, %p123
    %p126 = scmp.ne.s32.totalorder %s111, %s125
    %p127 = scmp.eq.s32.totalorder %s17, 0
    %p128 = por %p126, %p127
    %s129 = ssub.s32 %s11, %s18
    %p130 = scmp.eq.s32.totalorder %s129, 0
    %s132 = sadd.s32 %s131, 1
    %s133 = scalar_select %p130, %s131, %s132
    %p136 = pneg %p130
    %p137 = scmp.eq.s32.totalorder %s11, 1
    %p138 = por %p136, %p137
    %p139 = scmp.ne.s32.totalorder %s131, %s134
    %p140 = scmp.eq.s32.totalorder %s11, 0
    %p141 = por %p139, %p140
    %p142 = scmp.ne.s32.totalorder %s131, %s134
    %p143 = scmp.eq.s32.totalorder %s16, 1
    %p144 = por %p142, %p143
    %p145 = scmp.ne.s32.totalorder %s134, %s135
    %p146 = scmp.eq.s32.totalorder %s16, 0
    %p147 = por %p145, %p146
    %p148 = scmp.ne.s32.totalorder %s134, %s135
    %p149 = scmp.eq.s32.totalorder %s17, 1
    %p150 = por %p148, %p149
    %p152 = scmp.ne.s32.totalorder %s135, %s151
    %p153 = scmp.eq.s32.totalorder %s17, 0
    %p154 = por %p152, %p153
    %p155 = scmp.le.s32.totalorder 1, %s11
    %p156 = scmp.lt.s32.totalorder %s11, 3
    %p157 = pnand %p155, %p156
    %p158 = pneg %p157
    // Predicated region
    $region9: #{reference_encoder_forward.5} parent=5 // pred_check
      _
    $region10: #{reference_encoder_forward.5} parent=5 // pred_check_branch
      %160 = sbr.rel (%p157) target = $region12
    $region11: #{reference_encoder_forward.5} parent=5 // pred_region
      %s161 = ssub.s32 %s11, 1
      // Predicated region
      $region13: #{reference_encoder_forward.5} parent=11 // pred_check
        %p162 = pneg %p58
      $region14: #{reference_encoder_forward.5} parent=11 // pred_check_branch
        %164 = sbr.rel (%p162) target = $region16
      $region15: #{reference_encoder_forward.5} parent=11 // pred_region
        _
      $region16: #{reference_encoder_forward.5} parent=11 // pred_fallthru
        _
      // Predicated region
      $region17: #{reference_encoder_forward.5} parent=11 // pred_check
        %p165 = pneg %p79
      $region18: #{reference_encoder_forward.5} parent=11 // pred_check_branch
        %167 = sbr.rel (%p165) target = $region20
      $region19: #{reference_encoder_forward.5} parent=11 // pred_region
        _
      $region20: #{reference_encoder_forward.5} parent=11 // pred_fallthru
        _
      // Predicated region
      $region21: #{reference_encoder_forward.5} parent=11 // pred_check
        %p168 = pneg %p100
      $region22: #{reference_encoder_forward.5} parent=11 // pred_check_branch
        %170 = sbr.rel (%p168) target = $region24
      $region23: #{reference_encoder_forward.5} parent=11 // pred_region
        _
      $region24: #{reference_encoder_forward.5} parent=11 // pred_fallthru
        _
      // Predicated region
      $region25: #{reference_encoder_forward.5} parent=11 // pred_check
        %p171 = pneg %p121
      $region26: #{reference_encoder_forward.5} parent=11 // pred_check_branch
        %173 = sbr.rel (%p171) target = $region28
      $region27: #{reference_encoder_forward.5} parent=11 // pred_region
        _
      $region28: #{reference_encoder_forward.5} parent=11 // pred_fallthru
        _
    $region12: #{reference_encoder_forward.5} parent=5 // pred_fallthru
      _
    %p174 = scmp.lt.s32.totalorder %s11, 2
    // Predicated region
    $region29: #{reference_encoder_forward.5} parent=5 // pred_check
      %p175 = pneg %p174
    $region30: #{reference_encoder_forward.5} parent=5 // pred_check_branch
      %177 = sbr.rel (%p175) target = $region32
    $region31: #{reference_encoder_forward.5} parent=5 // pred_region
      // Predicated region
      $region33: #{reference_encoder_forward.5} parent=31 // pred_check
        %p178 = pneg %p31
      $region34: #{reference_encoder_forward.5} parent=31 // pred_check_branch
        %180 = sbr.rel (%p178) target = $region36
      $region35: #{reference_encoder_forward.5} parent=31 // pred_region
        %p181 = scmp.lt.s32.totalorder %s11, 1
        %s182 = scalar_select %p181, %s11, 1
        %s183 = smul.addr %s182, 2
        %s184 = smul.addr %s183, 4
        %s185 = scalar_lea.vmem %s0, %s184
      $region36: #{reference_encoder_forward.5} parent=31 // pred_fallthru
        _
    $region32: #{reference_encoder_forward.5} parent=5 // pred_fallthru
      _
    %p186 = scmp.le.s32.totalorder 1, %s11
    %p187 = scmp.lt.s32.totalorder %s11, 3
    %p188 = pnand %p186, %p187
    %p189 = pneg %p188
    // Predicated region
    $region37: #{reference_encoder_forward.5} parent=5 // pred_check
      _
    $region38: #{reference_encoder_forward.5} parent=5 // pred_check_branch
      %191 = sbr.rel (%p188) target = $region40
    $region39: #{reference_encoder_forward.5} parent=5 // pred_region
      %s192 = ssub.s32 %s11, 1
      %p193 = scmp.lt.s32.totalorder %s16, 1
      %s194 = scalar_select %p193, %s16, 1
      %s195 = smul.addr %s194, 2
      %s196 = smul.addr %s195, 4
      %s197 = scalar_lea.vmem %s0, %s196
      %p198 = pneg %p37
      %p199 = pneg %p34
      %p200 = pneg %p58
      %p201 = pneg %p55
      %p202 = pneg %p79
      %p203 = pneg %p76
      %p204 = pneg %p100
      %p205 = pneg %p97
      %p206 = pneg %p121
      %p207 = pneg %p118
      %p208 = pneg %p147
      %p209 = pneg %p144
      %p210 = scmp.lt.s32.totalorder %s16, 1
      %s211 = scalar_select %p210, %s16, 1
      %s212 = smul.addr %s211, 4
      %s213 = scalar_lea.vmem %s5, %s212
      %p214 = scmp.lt.s32.totalorder %s16, 1
      %s215 = scalar_select %p214, %s16, 1
      %s216 = smul.addr %s215, 2
      %s217 = smul.addr %s216, 4
      %s218 = scalar_lea.vmem %s0, %s217
      %p219 = scmp.lt.s32.totalorder %s16, 1
      %s220 = scalar_select %p219, %s16, 1
      %s221 = smul.addr %s220, 4
      %s222 = scalar_lea.vmem %s5, %s221
      %v224 = vld [vmem:[%s218] sm:$0xf]
      %v225 = vld [vmem:[%s218 + $0x4] sm:$0x1]
      %v226 = vld [vmem:[%s1] sm:$0xf]
      %v227 = vld [vmem:[%s1 + $0x4] sm:$0xf]
      %v228 = vld [vmem:[%s1 + $0x8] sm:$0x1]
      %v229 = vld [vmem:[%s2] sm:$0xf]
      %v230 = vld [vmem:[%s2 + $0x4] sm:$0xf]
      %v231 = vld [vmem:[%s2 + $0x8] sm:$0x1]
      %v233 = vunpack.c.l.b16 %v224
      %v234 = vpack.c.b16 %v233, %v233
      %235 = vrot.lane.b32.xlu0 %v234, 110
      %v236 = vpop.permute.xlu0 %235
      %v240 = vunpack.c.l.b16 %v229
      %v241 = vunpack.c.l.b16 %v230
      %v242 = vunpack.c.l.b16 %v231
      %v243 = vpack.c.b16 %v241, %v240
      %v244 = vpack.c.b16 %v242, %v242
      %vm246 = vcmask 146432
      %v248 = vsel %vm246, %v236, 0
      %vm250 = vcmask 1040384
      %v252 = vsel %vm250, %v244, 0
      %254 = vmatpush.bf16.msra.mxu0 0
      %255 = vmatpush.bf16.msra.mxu0 0
      %256 = vmatpush.bf16.msra.mxu0 0
      %257 = vmatpush.bf16.msra.mxu0 0
      %258 = vmatpush.bf16.msra.mxu0 0
      %259 = vmatpush.bf16.msra.mxu0 0
      %260 = vmatpush.bf16.msra.mxu0 %v252
      %261 = vmatpush.bf16.msra.mxu0 %v243
      %262 = vmatmul.bf16.gmra.mxu0 %v248
      %v263 = vpop.f32.mrf.mxu0
      %v264 = vadd.f32 0.0, %v263
      %v265 = vpop.f32.mrf.mxu0
      %266 = vdwg.mxu0
      %v270 = vunpack.c.l.b16 %v226
      %v271 = vunpack.c.l.b16 %v227
      %v272 = vunpack.c.l.b16 %v228
      %v273 = vpack.c.b16 %v271, %v270
      %v274 = vpack.c.b16 %v272, %v272
      %v277 = vsel %vm246, %v224, 0
      %v280 = vsel %vm250, %v274, 0
      %282 = vmatpush.bf16.msra.mxu0 0
      %283 = vmatpush.bf16.msra.mxu0 0
      %284 = vmatpush.bf16.msra.mxu0 0
      %285 = vmatpush.bf16.msra.mxu0 0
      %286 = vmatpush.bf16.msra.mxu0 0
      %287 = vmatpush.bf16.msra.mxu0 0
      %288 = vmatpush.bf16.msra.mxu0 %v280
      %289 = vmatpush.bf16.msra.mxu0 %v273
      %290 = vmatmul.bf16.gmra.mxu0 %v277
      %v291 = vpop.f32.mrf.mxu0
      %v292 = vadd.f32 %v264, %v291
      %v293 = vpop.f32.mrf.mxu0
      %294 = vdwg.mxu0
      %v295 = vld [vmem:[%s3] sm:$0xf]
      %v296 = vld [vmem:[%s3 + $0x4] sm:$0xf]
      %v297 = vld [vmem:[%s3 + $0x8] sm:$0x1]
      %v299 = vunpack.c.l.b16 %v225
      %v300 = vpack.c.b16 %v299, %v233
      %v302 = vshrl.u32 %v300, 16
      %v304 = vshll.u32 %v300, 16
      %v306 = vrot.slane %v304, 1
      %v307 = vor.u32 %v302, %v306
      %v311 = vunpack.c.l.b16 %v295
      %v312 = vunpack.c.l.b16 %v296
      %v313 = vunpack.c.l.b16 %v297
      %v314 = vpack.c.b16 %v312, %v311
      %v315 = vpack.c.b16 %v313, %v313
      %v318 = vsel %vm246, %v307, 0
      %v321 = vsel %vm250, %v315, 0
      %323 = vmatpush.bf16.msra.mxu0 0
      %324 = vmatpush.bf16.msra.mxu0 0
      %325 = vmatpush.bf16.msra.mxu0 0
      %326 = vmatpush.bf16.msra.mxu0 0
      %327 = vmatpush.bf16.msra.mxu0 0
      %328 = vmatpush.bf16.msra.mxu0 0
      %329 = vmatpush.bf16.msra.mxu0 %v321
      %330 = vmatpush.bf16.msra.mxu0 %v314
      %331 = vmatmul.bf16.gmra.mxu0 %v318
      %v332 = vpop.f32.mrf.mxu0
      %v333 = vadd.f32 0.0, %v332
      %v334 = vpop.f32.mrf.mxu0
      %335 = vdwg.mxu0
      %v336 = vadd.f32 %v292, %v333
      %v337 = vld [vmem:[%s4] sm:$0x1]
      %v339 = vperm.slane %v337, 0
      %v341 = vadd.f32 %v336, %v339
      %v342 = vmax.f32 %v341, 0.0
      %v343 = vpack.c.bf16 %v342, %v342
      %vm344 = vcmask 257024
      %345 = vst.msk [vmem:[%s222] sm:$0xf] %vm344, %v343
      %p346 = scmp.lt.s32.totalorder %s16, 1
      %s347 = scalar_select %p346, %s16, 1
      %s348 = smul.addr %s347, 4
      %s349 = scalar_lea.vmem %s5, %s348
      // Predicated region
      $region41: #{reference_encoder_forward.5} parent=39 // pred_check
        %p350 = pneg %p144
      $region42: #{reference_encoder_forward.5} parent=39 // pred_check_branch
        %352 = sbr.rel (%p350) target = $region44
      $region43: #{reference_encoder_forward.5} parent=39 // pred_region
        _
      $region44: #{reference_encoder_forward.5} parent=39 // pred_fallthru
        _
    $region40: #{reference_encoder_forward.5} parent=5 // pred_fallthru
      _
    %p353 = scmp.le.s32.totalorder 2, %s11
    // Predicated region
    $region45: #{reference_encoder_forward.5} parent=5 // pred_check
      %p354 = pneg %p353
    $region46: #{reference_encoder_forward.5} parent=5 // pred_check_branch
      %356 = sbr.rel (%p354) target = $region48
    $region47: #{reference_encoder_forward.5} parent=5 // pred_region
      %s357 = ssub.s32 %s11, 2
      // Predicated region
      $region49: #{reference_encoder_forward.5} parent=47 // pred_check
        %p358 = pneg %p150
      $region50: #{reference_encoder_forward.5} parent=47 // pred_check_branch
        %360 = sbr.rel (%p358) target = $region52
      $region51: #{reference_encoder_forward.5} parent=47 // pred_region
        %p361 = scmp.lt.s32.totalorder %s17, 1
        %s362 = scalar_select %p361, %s17, 1
        %s363 = smul.addr %s362, 4
        %s364 = scalar_lea.vmem %s5, %s363
      $region52: #{reference_encoder_forward.5} parent=47 // pred_fallthru
        _
    $region48: #{reference_encoder_forward.5} parent=5 // pred_fallthru
      _
  $region6: #{reference_encoder_forward.5} parent=0 // loop_footer
    %s15 = sadd.s32 1, %s11
  $region7: #{reference_encoder_forward.5} parent=0 // loop_footer_branch
    %10 = sbr.rel target = $region3
  $region8: #{reference_encoder_forward.5} parent=0 // loop_exit
    _

// kernel: reference_encoder_forward.6
$region0: #{reference_encoder_forward.6}
  #allocation0 [shape = 'u32[]', space=smem, size = 0x4, offset = 0x4, fixed_abs, tag = 'smem constant byte address 0x4 - core index']
  #allocation1 [shape = 'u32[72,128]{1,0:T(1,128)}', space=vmem, size = 0x9000, scoped, tag = 'internal scratch']
  %s0 = inlined_call_operand.vmem [shape: bf16[2,5,80], index: 0, kind: input, shape index: {}]
  %s1 = inlined_call_operand.vmem [shape: bf16[40,16], index: 1, kind: input, shape index: {}]
  %s2 = inlined_call_operand.vmem [shape: bf16[40,16], index: 2, kind: input, shape index: {}]
  %s3 = inlined_call_operand.vmem [shape: bf16[40,16], index: 3, kind: input, shape index: {}]
  %s4 = inlined_call_operand.vmem [shape: f32[1,16], index: 4, kind: input, shape index: {}]
  %s5 = inlined_call_operand.vmem [shape: bf16[2,4,16], index: 5, kind: output, shape index: {}]
  %s6 = sld [smem:[#allocation0]]
  $region53: #{reference_encoder_forward.6} parent=0
    _
  %s8 = ssub.s32 1, %s6
  %s9 = scalar_select 0, %s8, %s6
  loop: start=0, step=1, limit=4
  $region2: #{reference_encoder_forward.6} parent=0 // loop_pre_header
    _
  $region3: #{reference_encoder_forward.6} parent=0 // loop_header
    %s11 = sphi 0, %s15
    %p12 = scmp.ge.s32.totalorder %s11, 4
    %s21 = sphi 0, %s23
    %s24 = sphi 0, %s21
    %s25 = sphi 0, %s24
    %s41 = sphi 0, %s25
    %s45 = sphi 0, %s45
    %s47 = sphi 0, %s45
    %s48 = sphi 0, %s47
    %s62 = sphi 0, %s48
    %s66 = sphi 0, %s66
    %s68 = sphi 0, %s66
    %s69 = sphi 0, %s68
    %s83 = sphi 0, %s69
    %s87 = sphi 0, %s87
    %s89 = sphi 0, %s87
    %s90 = sphi 0, %s89
    %s104 = sphi 0, %s90
    %s108 = sphi 0, %s108
    %s110 = sphi 0, %s108
    %s111 = sphi 0, %s110
    %s125 = sphi 0, %s111
    %s131 = sphi 0, %s133
    %s134 = sphi 0, %s131
    %s135 = sphi 0, %s134
    %s151 = sphi 0, %s135
  $region4: #{reference_encoder_forward.6} parent=0 // loop_header_branch
    %14 = sbr.rel (%p12) target = $region8
  $region5: #{reference_encoder_forward.6} parent=0 // loop_body
    %s16 = ssub.s32 %s11, 1
    %s17 = ssub.s32 %s11, 2
    %s18 = sadd.s32 %s11, 1
    %s19 = ssub.s32 %s11, %s18
    %p20 = scmp.eq.s32.totalorder %s19, 0
    %s22 = sadd.s32 %s21, 1
    %s23 = scalar_select %p20, %s21, %s22
    %p26 = pneg %p20
    %p27 = scmp.eq.s32.totalorder %s11, 1
    %p28 = por %p26, %p27
    %p29 = scmp.ne.s32.totalorder %s21, %s24
    %p30 = scmp.eq.s32.totalorder %s11, 0
    %p31 = por %p29, %p30
    %p32 = scmp.ne.s32.totalorder %s21, %s24
    %p33 = scmp.eq.s32.totalorder %s16, 1
    %p34 = por %p32, %p33
    %p35 = scmp.ne.s32.totalorder %s24, %s25
    %p36 = scmp.eq.s32.totalorder %s16, 0
    %p37 = por %p35, %p36
    %p38 = scmp.ne.s32.totalorder %s24, %s25
    %p39 = scmp.eq.s32.totalorder %s17, 1
    %p40 = por %p38, %p39
    %p42 = scmp.ne.s32.totalorder %s25, %s41
    %p43 = scmp.eq.s32.totalorder %s17, 0
    %p44 = por %p42, %p43
    %s46 = sadd.s32 %s45, 1
    %p49 = scmp.eq.s32.totalorder %s11, 1
    %p50 = scmp.ne.s32.totalorder %s45, %s47
    %p51 = scmp.eq.s32.totalorder %s11, 0
    %p52 = por %p50, %p51
    %p53 = scmp.ne.s32.totalorder %s45, %s47
    %p54 = scmp.eq.s32.totalorder %s16, 1
    %p55 = por %p53, %p54
    %p56 = scmp.ne.s32.totalorder %s47, %s48
    %p57 = scmp.eq.s32.totalorder %s16, 0
    %p58 = por %p56, %p57
    %p59 = scmp.ne.s32.totalorder %s47, %s48
    %p60 = scmp.eq.s32.totalorder %s17, 1
    %p61 = por %p59, %p60
    %p63 = scmp.ne.s32.totalorder %s48, %s62
    %p64 = scmp.eq.s32.totalorder %s17, 0
    %p65 = por %p63, %p64
    %s67 = sadd.s32 %s66, 1
    %p70 = scmp.eq.s32.totalorder %s11, 1
    %p71 = scmp.ne.s32.totalorder %s66, %s68
    %p72 = scmp.eq.s32.totalorder %s11, 0
    %p73 = por %p71, %p72
    %p74 = scmp.ne.s32.totalorder %s66, %s68
    %p75 = scmp.eq.s32.totalorder %s16, 1
    %p76 = por %p74, %p75
    %p77 = scmp.ne.s32.totalorder %s68, %s69
    %p78 = scmp.eq.s32.totalorder %s16, 0
    %p79 = por %p77, %p78
    %p80 = scmp.ne.s32.totalorder %s68, %s69
    %p81 = scmp.eq.s32.totalorder %s17, 1
    %p82 = por %p80, %p81
    %p84 = scmp.ne.s32.totalorder %s69, %s83
    %p85 = scmp.eq.s32.totalorder %s17, 0
    %p86 = por %p84, %p85
    %s88 = sadd.s32 %s87, 1
    %p91 = scmp.eq.s32.totalorder %s11, 1
    %p92 = scmp.ne.s32.totalorder %s87, %s89
    %p93 = scmp.eq.s32.totalorder %s11, 0
    %p94 = por %p92, %p93
    %p95 = scmp.ne.s32.totalorder %s87, %s89
    %p96 = scmp.eq.s32.totalorder %s16, 1
    %p97 = por %p95, %p96
    %p98 = scmp.ne.s32.totalorder %s89, %s90
    %p99 = scmp.eq.s32.totalorder %s16, 0
    %p100 = por %p98, %p99
    %p101 = scmp.ne.s32.totalorder %s89, %s90
    %p102 = scmp.eq.s32.totalorder %s17, 1
    %p103 = por %p101, %p102
    %p105 = scmp.ne.s32.totalorder %s90, %s104
    %p106 = scmp.eq.s32.totalorder %s17, 0
    %p107 = por %p105, %p106
    %s109 = sadd.s32 %s108, 1
    %p112 = scmp.eq.s32.totalorder %s11, 1
    %p113 = scmp.ne.s32.totalorder %s108, %s110
    %p114 = scmp.eq.s32.totalorder %s11, 0
    %p115 = por %p113, %p114
    %p116 = scmp.ne.s32.totalorder %s108, %s110
    %p117 = scmp.eq.s32.totalorder %s16, 1
    %p118 = por %p116, %p117
    %p119 = scmp.ne.s32.totalorder %s110, %s111
    %p120 = scmp.eq.s32.totalorder %s16, 0
    %p121 = por %p119, %p120
    %p122 = scmp.ne.s32.totalorder %s110, %s111
    %p123 = scmp.eq.s32.totalorder %s17, 1
    %p124 = por %p122, %p123
    %p126 = scmp.ne.s32.totalorder %s111, %s125
    %p127 = scmp.eq.s32.totalorder %s17, 0
    %p128 = por %p126, %p127
    %s129 = ssub.s32 %s11, %s18
    %p130 = scmp.eq.s32.totalorder %s129, 0
    %s132 = sadd.s32 %s131, 1
    %s133 = scalar_select %p130, %s131, %s132
    %p136 = pneg %p130
    %p137 = scmp.eq.s32.totalorder %s11, 1
    %p138 = por %p136, %p137
    %p139 = scmp.ne.s32.totalorder %s131, %s134
    %p140 = scmp.eq.s32.totalorder %s11, 0
    %p141 = por %p139, %p140
    %p142 = scmp.ne.s32.totalorder %s131, %s134
    %p143 = scmp.eq.s32.totalorder %s16, 1
    %p144 = por %p142, %p143
    %p145 = scmp.ne.s32.totalorder %s134, %s135
    %p146 = scmp.eq.s32.totalorder %s16, 0
    %p147 = por %p145, %p146
    %p148 = scmp.ne.s32.totalorder %s134, %s135
    %p149 = scmp.eq.s32.totalorder %s17, 1
    %p150 = por %p148, %p149
    %p152 = scmp.ne.s32.totalorder %s135, %s151
    %p153 = scmp.eq.s32.totalorder %s17, 0
    %p154 = por %p152, %p153
    %p155 = scmp.le.s32.totalorder 1, %s11
    %p156 = scmp.lt.s32.totalorder %s11, 3
    %p157 = pnand %p155, %p156
    %p158 = pneg %p157
    // Predicated region
    $region9: #{reference_encoder_forward.6} parent=5 // pred_check
      _
    $region10: #{reference_encoder_forward.6} parent=5 // pred_check_branch
      %160 = sbr.rel (%p157) target = $region12
    $region11: #{reference_encoder_forward.6} parent=5 // pred_region
      %s161 = ssub.s32 %s11, 1
      // Predicated region
      $region13: #{reference_encoder_forward.6} parent=11 // pred_check
        %p162 = pneg %p58
      $region14: #{reference_encoder_forward.6} parent=11 // pred_check_branch
        %164 = sbr.rel (%p162) target = $region16
      $region15: #{reference_encoder_forward.6} parent=11 // pred_region
        _
      $region16: #{reference_encoder_forward.6} parent=11 // pred_fallthru
        _
      // Predicated region
      $region17: #{reference_encoder_forward.6} parent=11 // pred_check
        %p165 = pneg %p79
      $region18: #{reference_encoder_forward.6} parent=11 // pred_check_branch
        %167 = sbr.rel (%p165) target = $region20
      $region19: #{reference_encoder_forward.6} parent=11 // pred_region
        _
      $region20: #{reference_encoder_forward.6} parent=11 // pred_fallthru
        _
      // Predicated region
      $region21: #{reference_encoder_forward.6} parent=11 // pred_check
        %p168 = pneg %p100
      $region22: #{reference_encoder_forward.6} parent=11 // pred_check_branch
        %170 = sbr.rel (%p168) target = $region24
      $region23: #{reference_encoder_forward.6} parent=11 // pred_region
        _
      $region24: #{reference_encoder_forward.6} parent=11 // pred_fallthru
        _
      // Predicated region
      $region25: #{reference_encoder_forward.6} parent=11 // pred_check
        %p171 = pneg %p121
      $region26: #{reference_encoder_forward.6} parent=11 // pred_check_branch
        %173 = sbr.rel (%p171) target = $region28
      $region27: #{reference_encoder_forward.6} parent=11 // pred_region
        _
      $region28: #{reference_encoder_forward.6} parent=11 // pred_fallthru
        _
    $region12: #{reference_encoder_forward.6} parent=5 // pred_fallthru
      _
    %p174 = scmp.lt.s32.totalorder %s11, 2
    // Predicated region
    $region29: #{reference_encoder_forward.6} parent=5 // pred_check
      %p175 = pneg %p174
    $region30: #{reference_encoder_forward.6} parent=5 // pred_check_branch
      %177 = sbr.rel (%p175) target = $region32
    $region31: #{reference_encoder_forward.6} parent=5 // pred_region
      // Predicated region
      $region33: #{reference_encoder_forward.6} parent=31 // pred_check
        %p178 = pneg %p31
      $region34: #{reference_encoder_forward.6} parent=31 // pred_check_branch
        %180 = sbr.rel (%p178) target = $region36
      $region35: #{reference_encoder_forward.6} parent=31 // pred_region
        %p181 = scmp.lt.s32.totalorder %s11, 1
        %s182 = scalar_select %p181, %s11, 1
        %s183 = smul.addr %s182, 4
        %s184 = scalar_lea.vmem %s0, %s183
      $region36: #{reference_encoder_forward.6} parent=31 // pred_fallthru
        _
    $region32: #{reference_encoder_forward.6} parent=5 // pred_fallthru
      _
    %p185 = scmp.le.s32.totalorder 1, %s11
    %p186 = scmp.lt.s32.totalorder %s11, 3
    %p187 = pnand %p185, %p186
    %p188 = pneg %p187
    // Predicated region
    $region37: #{reference_encoder_forward.6} parent=5 // pred_check
      _
    $region38: #{reference_encoder_forward.6} parent=5 // pred_check_branch
      %190 = sbr.rel (%p187) target = $region40
    $region39: #{reference_encoder_forward.6} parent=5 // pred_region
      %s191 = ssub.s32 %s11, 1
      %p192 = scmp.lt.s32.totalorder %s16, 1
      %s193 = scalar_select %p192, %s16, 1
      %s194 = smul.addr %s193, 4
      %s195 = scalar_lea.vmem %s0, %s194
      %p196 = pneg %p37
      %p197 = pneg %p34
      %p198 = pneg %p58
      %p199 = pneg %p55
      %p200 = pneg %p79
      %p201 = pneg %p76
      %p202 = pneg %p100
      %p203 = pneg %p97
      %p204 = pneg %p121
      %p205 = pneg %p118
      %p206 = pneg %p147
      %p207 = pneg %p144
      %p208 = scmp.lt.s32.totalorder %s16, 1
      %s209 = scalar_select %p208, %s16, 1
      %s210 = smul.addr %s209, 2
      %s211 = scalar_lea.vmem %s5, %s210
      %p212 = scmp.lt.s32.totalorder %s16, 1
      %s213 = scalar_select %p212, %s16, 1
      %s214 = smul.addr %s213, 4
      %s215 = scalar_lea.vmem %s0, %s214
      %p216 = scmp.lt.s32.totalorder %s16, 1
      %s217 = scalar_select %p216, %s16, 1
      %s218 = smul.addr %s217, 2
      %s219 = scalar_lea.vmem %s5, %s218
      %v221 = vld [vmem:[%s215] sm:$0x7]
      %v222 = vld [vmem:[%s1] sm:$0xf]
      %v223 = vld [vmem:[%s1 + $0x4] sm:$0xf]
      %v224 = vld [vmem:[%s1 + $0x8] sm:$0xf]
      %v225 = vld [vmem:[%s1 + $0xc] sm:$0xf]
      %v226 = vld [vmem:[%s1 + $0x10] sm:$0xf]
      %v227 = vld [vmem:[%s2] sm:$0xf]
      %v228 = vld [vmem:[%s2 + $0x4] sm:$0xf]
      %v229 = vld [vmem:[%s2 + $0x8] sm:$0xf]
      %v230 = vld [vmem:[%s2 + $0xc] sm:$0xf]
      %v231 = vld [vmem:[%s2 + $0x10] sm:$0xf]
      %v233 = vunpack.c.l.b16 %v221
      %v234 = vpack.c.b16 %v233, %v233
      %235 = vrot.lane.b32.xlu0 %v234, 88
      %v236 = vpop.permute.xlu0 %235
      %v242 = vunpack.c.l.b16 %v227
      %v243 = vunpack.c.l.b16 %v228
      %v244 = vunpack.c.l.b16 %v229
      %v245 = vunpack.c.l.b16 %v230
      %v246 = vunpack.c.l.b16 %v231
      %v247 = vpack.c.b16 %v243, %v242
      %v248 = vpack.c.b16 %v245, %v244
      %v249 = vpack.c.b16 %v246, %v246
      %vm252 = vcmask 326656
      %v254 = vsel %vm252, %v236, 0
      %vm256 = vcmask 1043456
      %v258 = vsel %vm256, %v249, 0
      %260 = vmatpush.bf16.msra.mxu0 0
      %261 = vmatpush.bf16.msra.mxu0 0
      %262 = vmatpush.bf16.msra.mxu0 0
      %263 = vmatpush.bf16.msra.mxu0 0
      %264 = vmatpush.bf16.msra.mxu0 0
      %265 = vmatpush.bf16.msra.mxu0 %v258
      %266 = vmatpush.bf16.msra.mxu0 %v248
      %267 = vmatpush.bf16.msra.mxu0 %v247
      %268 = vmatmul.bf16.gmra.mxu0 %v254
      %v269 = vpop.f32.mrf.mxu0
      %v270 = vadd.f32 0.0, %v269
      %v271 = vpop.f32.mrf.mxu0
      %272 = vdwg.mxu0
      %v278 = vunpack.c.l.b16 %v222
      %v279 = vunpack.c.l.b16 %v223
      %v280 = vunpack.c.l.b16 %v224
      %v281 = vunpack.c.l.b16 %v225
      %v282 = vunpack.c.l.b16 %v226
      %v283 = vpack.c.b16 %v279, %v278
      %v284 = vpack.c.b16 %v281, %v280
      %v285 = vpack.c.b16 %v282, %v282
      %v289 = vsel %vm252, %v221, 0
      %v292 = vsel %vm256, %v285, 0
      %294 = vmatpush.bf16.msra.mxu0 0
      %295 = vmatpush.bf16.msra.mxu0 0
      %296 = vmatpush.bf16.msra.mxu0 0
      %297 = vmatpush.bf16.msra.mxu0 0
      %298 = vmatpush.bf16.msra.mxu0 0
      %299 = vmatpush.bf16.msra.mxu0 %v292
      %300 = vmatpush.bf16.msra.mxu0 %v284
      %301 = vmatpush.bf16.msra.mxu0 %v283
      %302 = vmatmul.bf16.gmra.mxu0 %v289
      %v303 = vpop.f32.mrf.mxu0
      %v304 = vadd.f32 %v270, %v303
      %v305 = vpop.f32.mrf.mxu0
      %306 = vdwg.mxu0
      %v307 = vld [vmem:[%s3] sm:$0xf]
      %v308 = vld [vmem:[%s3 + $0x4] sm:$0xf]
      %v309 = vld [vmem:[%s3 + $0x8] sm:$0xf]
      %v310 = vld [vmem:[%s3 + $0xc] sm:$0xf]
      %v311 = vld [vmem:[%s3 + $0x10] sm:$0xf]
      %v313 = vshrl.u32 %v234, 16
      %v315 = vshll.u32 %v234, 16
      %v317 = vrot.slane %v315, 1
      %v318 = vor.u32 %v313, %v317
      %v324 = vunpack.c.l.b16 %v307
      %v325 = vunpack.c.l.b16 %v308
      %v326 = vunpack.c.l.b16 %v309
      %v327 = vunpack.c.l.b16 %v310
      %v328 = vunpack.c.l.b16 %v311
      %v329 = vpack.c.b16 %v325, %v324
      %v330 = vpack.c.b16 %v327, %v326
      %v331 = vpack.c.b16 %v328, %v328
      %v335 = vsel %vm252, %v318, 0
      %v338 = vsel %vm256, %v331, 0
      %340 = vmatpush.bf16.msra.mxu0 0
      %341 = vmatpush.bf16.msra.mxu0 0
      %342 = vmatpush.bf16.msra.mxu0 0
      %343 = vmatpush.bf16.msra.mxu0 0
      %344 = vmatpush.bf16.msra.mxu0 0
      %345 = vmatpush.bf16.msra.mxu0 %v338
      %346 = vmatpush.bf16.msra.mxu0 %v330
      %347 = vmatpush.bf16.msra.mxu0 %v329
      %348 = vmatmul.bf16.gmra.mxu0 %v335
      %v349 = vpop.f32.mrf.mxu0
      %v350 = vadd.f32 0.0, %v349
      %v351 = vpop.f32.mrf.mxu0
      %352 = vdwg.mxu0
      %v353 = vadd.f32 %v304, %v350
      %v354 = vld [vmem:[%s4] sm:$0x1]
      %v356 = vperm.slane %v354, 0
      %v358 = vadd.f32 %v353, %v356
      %v359 = vmax.f32 %v358, 0.0
      %v360 = vpack.c.bf16 %v359, %v359
      %vm361 = vcmask 123904
      %362 = vst.msk [vmem:[%s219] sm:$0x3] %vm361, %v360
      %p363 = scmp.lt.s32.totalorder %s16, 1
      %s364 = scalar_select %p363, %s16, 1
      %s365 = smul.addr %s364, 2
      %s366 = scalar_lea.vmem %s5, %s365
      // Predicated region
      $region41: #{reference_encoder_forward.6} parent=39 // pred_check
        %p367 = pneg %p144
      $region42: #{reference_encoder_forward.6} parent=39 // pred_check_branch
        %369 = sbr.rel (%p367) target = $region44
      $region43: #{reference_encoder_forward.6} parent=39 // pred_region
        _
      $region44: #{reference_encoder_forward.6} parent=39 // pred_fallthru
        _
    $region40: #{reference_encoder_forward.6} parent=5 // pred_fallthru
      _
    %p370 = scmp.le.s32.totalorder 2, %s11
    // Predicated region
    $region45: #{reference_encoder_forward.6} parent=5 // pred_check
      %p371 = pneg %p370
    $region46: #{reference_encoder_forward.6} parent=5 // pred_check_branch
      %373 = sbr.rel (%p371) target = $region48
    $region47: #{reference_encoder_forward.6} parent=5 // pred_region
      %s374 = ssub.s32 %s11, 2
      // Predicated region
      $region49: #{reference_encoder_forward.6} parent=47 // pred_check
        %p375 = pneg %p150
      $region50: #{reference_encoder_forward.6} parent=47 // pred_check_branch
        %377 = sbr.rel (%p375) target = $region52
      $region51: #{reference_encoder_forward.6} parent=47 // pred_region
        %p378 = scmp.lt.s32.totalorder %s17, 1
        %s379 = scalar_select %p378, %s17, 1
        %s380 = smul.addr %s379, 2
        %s381 = scalar_lea.vmem %s5, %s380
      $region52: #{reference_encoder_forward.6} parent=47 // pred_fallthru
        _
    $region48: #{reference_encoder_forward.6} parent=5 // pred_fallthru
      _
  $region6: #{reference_encoder_forward.6} parent=0 // loop_footer
    %s15 = sadd.s32 1, %s11
  $region7: #{reference_encoder_forward.6} parent=0 // loop_footer_branch
    %10 = sbr.rel target = $region3
  $region8: #{reference_encoder_forward.6} parent=0 // loop_exit
    _

// kernel: reference_encoder_forward.8
$region0: #{reference_encoder_forward.8}
  #allocation0 [shape = 'u32[]', space=smem, size = 0x4, offset = 0x4, fixed_abs, tag = 'smem constant byte address 0x4 - core index']
  #allocation1 [shape = 'u32[72,128]{1,0:T(1,128)}', space=vmem, size = 0x9000, scoped, tag = 'internal scratch']
  %s0 = inlined_call_operand.vmem [shape: bf16[8,16], index: 0, kind: input, shape index: {}]
  %s1 = inlined_call_operand.vmem [shape: bf16[16,96], index: 1, kind: input, shape index: {}]
  %s2 = inlined_call_operand.vmem [shape: f32[1,96], index: 2, kind: input, shape index: {}]
  %s3 = inlined_call_operand.vmem [shape: bf16[8,96], index: 3, kind: output, shape index: {}]
  %s4 = sld [smem:[#allocation0]]
  $region22: #{reference_encoder_forward.8} parent=0
    _
  %s6 = ssub.s32 1, %s4
  %s7 = scalar_select 0, %s6, %s4
  // Predicated region
  $region2: #{reference_encoder_forward.8} parent=0 // pred_check
    _
  $region3: #{reference_encoder_forward.8} parent=0 // pred_check_branch
    %9 = sbr.rel (0) target = $region5
  $region4: #{reference_encoder_forward.8} parent=0 // pred_region
    _
  $region5: #{reference_encoder_forward.8} parent=0 // pred_fallthru
    _
  // Predicated region
  $region6: #{reference_encoder_forward.8} parent=0 // pred_check
    _
  $region7: #{reference_encoder_forward.8} parent=0 // pred_check_branch
    %11 = sbr.rel (0) target = $region9
  $region8: #{reference_encoder_forward.8} parent=0 // pred_region
    _
  $region9: #{reference_encoder_forward.8} parent=0 // pred_fallthru
    _
  // Predicated region
  $region10: #{reference_encoder_forward.8} parent=0 // pred_check
    _
  $region11: #{reference_encoder_forward.8} parent=0 // pred_check_branch
    %13 = sbr.rel (0) target = $region13
  $region12: #{reference_encoder_forward.8} parent=0 // pred_region
    _
  $region13: #{reference_encoder_forward.8} parent=0 // pred_fallthru
    _
  %v15 = vld [vmem:[%s0] sm:$0xf]
  %v16 = vld [vmem:[%s1] sm:$0xf]
  %v17 = vld [vmem:[%s1 + $0x4] sm:$0xf]
  %v18 = vld [vmem:[%s2] sm:$0x1]
  %v20 = vperm.slane %v18, 0
  %v24 = vunpack.c.l.b16 %v16
  %v25 = vunpack.c.l.b16 %v17
  %v26 = vpack.c.b16 %v25, %v24
  %vm28 = vcmask 130048
  %v30 = vsel %vm28, %v15, 0
  %32 = vmatpush.bf16.msra.mxu0 0
  %33 = vmatpush.bf16.msra.mxu0 0
  %34 = vmatpush.bf16.msra.mxu0 0
  %35 = vmatpush.bf16.msra.mxu0 0
  %36 = vmatpush.bf16.msra.mxu0 0
  %37 = vmatpush.bf16.msra.mxu0 0
  %38 = vmatpush.bf16.msra.mxu0 0
  %39 = vmatpush.bf16.msra.mxu0 %v26
  %40 = vmatmul.bf16.gmra.mxu0 %v30
  %v41 = vpop.f32.mrf.mxu0
  %v42 = vadd.f32 %v20, %v41
  %v43 = vpop.f32.mrf.mxu0
  %44 = vdwg.mxu0
  %v45 = vpack.c.bf16 %v42, %v42
  %vm46 = vcmask 781312
  %47 = vst.msk [vmem:[%s3] sm:$0xf] %vm46, %v45
  // Predicated region
  $region14: #{reference_encoder_forward.8} parent=0 // pred_check
    _
  $region15: #{reference_encoder_forward.8} parent=0 // pred_check_branch
    %49 = sbr.rel (0) target = $region17
  $region16: #{reference_encoder_forward.8} parent=0 // pred_region
    _
  $region17: #{reference_encoder_forward.8} parent=0 // pred_fallthru
    _
  // Predicated region
  $region18: #{reference_encoder_forward.8} parent=0 // pred_check
    _
  $region19: #{reference_encoder_forward.8} parent=0 // pred_check_branch
    %51 = sbr.rel (0) target = $region21
  $region20: #{reference_encoder_forward.8} parent=0 // pred_region
    _
  $region21: #{reference_encoder_forward.8} parent=0 // pred_fallthru
    _

// kernel: reference_encoder_forward.7
$region0: #{reference_encoder_forward.7}
  #allocation0 [shape = 'u32[]', space=smem, size = 0x4, offset = 0x4, fixed_abs, tag = 'smem constant byte address 0x4 - core index']
  #allocation1 [shape = 'u32[72,128]{1,0:T(1,128)}', space=vmem, size = 0x9000, scoped, tag = 'internal scratch']
  %s0 = inlined_call_operand.vmem [shape: bf16[2,3,48], index: 0, kind: input, shape index: {}]
  %s1 = inlined_call_operand.vmem [shape: bf16[24,16], index: 1, kind: input, shape index: {}]
  %s2 = inlined_call_operand.vmem [shape: bf16[24,16], index: 2, kind: input, shape index: {}]
  %s3 = inlined_call_operand.vmem [shape: bf16[24,16], index: 3, kind: input, shape index: {}]
  %s4 = inlined_call_operand.vmem [shape: f32[1,16], index: 4, kind: input, shape index: {}]
  %s5 = inlined_call_operand.vmem [shape: bf16[2,2,16], index: 5, kind: output, shape index: {}]
  %s6 = sld [smem:[#allocation0]]
  $region53: #{reference_encoder_forward.7} parent=0
    _
  %s8 = ssub.s32 1, %s6
  %s9 = scalar_select 0, %s8, %s6
  loop: start=0, step=1, limit=4
  $region2: #{reference_encoder_forward.7} parent=0 // loop_pre_header
    _
  $region3: #{reference_encoder_forward.7} parent=0 // loop_header
    %s11 = sphi 0, %s15
    %p12 = scmp.ge.s32.totalorder %s11, 4
    %s21 = sphi 0, %s23
    %s24 = sphi 0, %s21
    %s25 = sphi 0, %s24
    %s41 = sphi 0, %s25
    %s45 = sphi 0, %s45
    %s47 = sphi 0, %s45
    %s48 = sphi 0, %s47
    %s62 = sphi 0, %s48
    %s66 = sphi 0, %s66
    %s68 = sphi 0, %s66
    %s69 = sphi 0, %s68
    %s83 = sphi 0, %s69
    %s87 = sphi 0, %s87
    %s89 = sphi 0, %s87
    %s90 = sphi 0, %s89
    %s104 = sphi 0, %s90
    %s108 = sphi 0, %s108
    %s110 = sphi 0, %s108
    %s111 = sphi 0, %s110
    %s125 = sphi 0, %s111
    %s131 = sphi 0, %s133
    %s134 = sphi 0, %s131
    %s135 = sphi 0, %s134
    %s151 = sphi 0, %s135
  $region4: #{reference_encoder_forward.7} parent=0 // loop_header_branch
    %14 = sbr.rel (%p12) target = $region8
  $region5: #{reference_encoder_forward.7} parent=0 // loop_body
    %s16 = ssub.s32 %s11, 1
    %s17 = ssub.s32 %s11, 2
    %s18 = sadd.s32 %s11, 1
    %s19 = ssub.s32 %s11, %s18
    %p20 = scmp.eq.s32.totalorder %s19, 0
    %s22 = sadd.s32 %s21, 1
    %s23 = scalar_select %p20, %s21, %s22
    %p26 = pneg %p20
    %p27 = scmp.eq.s32.totalorder %s11, 1
    %p28 = por %p26, %p27
    %p29 = scmp.ne.s32.totalorder %s21, %s24
    %p30 = scmp.eq.s32.totalorder %s11, 0
    %p31 = por %p29, %p30
    %p32 = scmp.ne.s32.totalorder %s21, %s24
    %p33 = scmp.eq.s32.totalorder %s16, 1
    %p34 = por %p32, %p33
    %p35 = scmp.ne.s32.totalorder %s24, %s25
    %p36 = scmp.eq.s32.totalorder %s16, 0
    %p37 = por %p35, %p36
    %p38 = scmp.ne.s32.totalorder %s24, %s25
    %p39 = scmp.eq.s32.totalorder %s17, 1
    %p40 = por %p38, %p39
    %p42 = scmp.ne.s32.totalorder %s25, %s41
    %p43 = scmp.eq.s32.totalorder %s17, 0
    %p44 = por %p42, %p43
    %s46 = sadd.s32 %s45, 1
    %p49 = scmp.eq.s32.totalorder %s11, 1
    %p50 = scmp.ne.s32.totalorder %s45, %s47
    %p51 = scmp.eq.s32.totalorder %s11, 0
    %p52 = por %p50, %p51
    %p53 = scmp.ne.s32.totalorder %s45, %s47
    %p54 = scmp.eq.s32.totalorder %s16, 1
    %p55 = por %p53, %p54
    %p56 = scmp.ne.s32.totalorder %s47, %s48
    %p57 = scmp.eq.s32.totalorder %s16, 0
    %p58 = por %p56, %p57
    %p59 = scmp.ne.s32.totalorder %s47, %s48
    %p60 = scmp.eq.s32.totalorder %s17, 1
    %p61 = por %p59, %p60
    %p63 = scmp.ne.s32.totalorder %s48, %s62
    %p64 = scmp.eq.s32.totalorder %s17, 0
    %p65 = por %p63, %p64
    %s67 = sadd.s32 %s66, 1
    %p70 = scmp.eq.s32.totalorder %s11, 1
    %p71 = scmp.ne.s32.totalorder %s66, %s68
    %p72 = scmp.eq.s32.totalorder %s11, 0
    %p73 = por %p71, %p72
    %p74 = scmp.ne.s32.totalorder %s66, %s68
    %p75 = scmp.eq.s32.totalorder %s16, 1
    %p76 = por %p74, %p75
    %p77 = scmp.ne.s32.totalorder %s68, %s69
    %p78 = scmp.eq.s32.totalorder %s16, 0
    %p79 = por %p77, %p78
    %p80 = scmp.ne.s32.totalorder %s68, %s69
    %p81 = scmp.eq.s32.totalorder %s17, 1
    %p82 = por %p80, %p81
    %p84 = scmp.ne.s32.totalorder %s69, %s83
    %p85 = scmp.eq.s32.totalorder %s17, 0
    %p86 = por %p84, %p85
    %s88 = sadd.s32 %s87, 1
    %p91 = scmp.eq.s32.totalorder %s11, 1
    %p92 = scmp.ne.s32.totalorder %s87, %s89
    %p93 = scmp.eq.s32.totalorder %s11, 0
    %p94 = por %p92, %p93
    %p95 = scmp.ne.s32.totalorder %s87, %s89
    %p96 = scmp.eq.s32.totalorder %s16, 1
    %p97 = por %p95, %p96
    %p98 = scmp.ne.s32.totalorder %s89, %s90
    %p99 = scmp.eq.s32.totalorder %s16, 0
    %p100 = por %p98, %p99
    %p101 = scmp.ne.s32.totalorder %s89, %s90
    %p102 = scmp.eq.s32.totalorder %s17, 1
    %p103 = por %p101, %p102
    %p105 = scmp.ne.s32.totalorder %s90, %s104
    %p106 = scmp.eq.s32.totalorder %s17, 0
    %p107 = por %p105, %p106
    %s109 = sadd.s32 %s108, 1
    %p112 = scmp.eq.s32.totalorder %s11, 1
    %p113 = scmp.ne.s32.totalorder %s108, %s110
    %p114 = scmp.eq.s32.totalorder %s11, 0
    %p115 = por %p113, %p114
    %p116 = scmp.ne.s32.totalorder %s108, %s110
    %p117 = scmp.eq.s32.totalorder %s16, 1
    %p118 = por %p116, %p117
    %p119 = scmp.ne.s32.totalorder %s110, %s111
    %p120 = scmp.eq.s32.totalorder %s16, 0
    %p121 = por %p119, %p120
    %p122 = scmp.ne.s32.totalorder %s110, %s111
    %p123 = scmp.eq.s32.totalorder %s17, 1
    %p124 = por %p122, %p123
    %p126 = scmp.ne.s32.totalorder %s111, %s125
    %p127 = scmp.eq.s32.totalorder %s17, 0
    %p128 = por %p126, %p127
    %s129 = ssub.s32 %s11, %s18
    %p130 = scmp.eq.s32.totalorder %s129, 0
    %s132 = sadd.s32 %s131, 1
    %s133 = scalar_select %p130, %s131, %s132
    %p136 = pneg %p130
    %p137 = scmp.eq.s32.totalorder %s11, 1
    %p138 = por %p136, %p137
    %p139 = scmp.ne.s32.totalorder %s131, %s134
    %p140 = scmp.eq.s32.totalorder %s11, 0
    %p141 = por %p139, %p140
    %p142 = scmp.ne.s32.totalorder %s131, %s134
    %p143 = scmp.eq.s32.totalorder %s16, 1
    %p144 = por %p142, %p143
    %p145 = scmp.ne.s32.totalorder %s134, %s135
    %p146 = scmp.eq.s32.totalorder %s16, 0
    %p147 = por %p145, %p146
    %p148 = scmp.ne.s32.totalorder %s134, %s135
    %p149 = scmp.eq.s32.totalorder %s17, 1
    %p150 = por %p148, %p149
    %p152 = scmp.ne.s32.totalorder %s135, %s151
    %p153 = scmp.eq.s32.totalorder %s17, 0
    %p154 = por %p152, %p153
    %p155 = scmp.le.s32.totalorder 1, %s11
    %p156 = scmp.lt.s32.totalorder %s11, 3
    %p157 = pnand %p155, %p156
    %p158 = pneg %p157
    // Predicated region
    $region9: #{reference_encoder_forward.7} parent=5 // pred_check
      _
    $region10: #{reference_encoder_forward.7} parent=5 // pred_check_branch
      %160 = sbr.rel (%p157) target = $region12
    $region11: #{reference_encoder_forward.7} parent=5 // pred_region
      %s161 = ssub.s32 %s11, 1
      // Predicated region
      $region13: #{reference_encoder_forward.7} parent=11 // pred_check
        %p162 = pneg %p58
      $region14: #{reference_encoder_forward.7} parent=11 // pred_check_branch
        %164 = sbr.rel (%p162) target = $region16
      $region15: #{reference_encoder_forward.7} parent=11 // pred_region
        _
      $region16: #{reference_encoder_forward.7} parent=11 // pred_fallthru
        _
      // Predicated region
      $region17: #{reference_encoder_forward.7} parent=11 // pred_check
        %p165 = pneg %p79
      $region18: #{reference_encoder_forward.7} parent=11 // pred_check_branch
        %167 = sbr.rel (%p165) target = $region20
      $region19: #{reference_encoder_forward.7} parent=11 // pred_region
        _
      $region20: #{reference_encoder_forward.7} parent=11 // pred_fallthru
        _
      // Predicated region
      $region21: #{reference_encoder_forward.7} parent=11 // pred_check
        %p168 = pneg %p100
      $region22: #{reference_encoder_forward.7} parent=11 // pred_check_branch
        %170 = sbr.rel (%p168) target = $region24
      $region23: #{reference_encoder_forward.7} parent=11 // pred_region
        _
      $region24: #{reference_encoder_forward.7} parent=11 // pred_fallthru
        _
      // Predicated region
      $region25: #{reference_encoder_forward.7} parent=11 // pred_check
        %p171 = pneg %p121
      $region26: #{reference_encoder_forward.7} parent=11 // pred_check_branch
        %173 = sbr.rel (%p171) target = $region28
      $region27: #{reference_encoder_forward.7} parent=11 // pred_region
        _
      $region28: #{reference_encoder_forward.7} parent=11 // pred_fallthru
        _
    $region12: #{reference_encoder_forward.7} parent=5 // pred_fallthru
      _
    %p174 = scmp.lt.s32.totalorder %s11, 2
    // Predicated region
    $region29: #{reference_encoder_forward.7} parent=5 // pred_check
      %p175 = pneg %p174
    $region30: #{reference_encoder_forward.7} parent=5 // pred_check_branch
      %177 = sbr.rel (%p175) target = $region32
    $region31: #{reference_encoder_forward.7} parent=5 // pred_region
      // Predicated region
      $region33: #{reference_encoder_forward.7} parent=31 // pred_check
        %p178 = pneg %p31
      $region34: #{reference_encoder_forward.7} parent=31 // pred_check_branch
        %180 = sbr.rel (%p178) target = $region36
      $region35: #{reference_encoder_forward.7} parent=31 // pred_region
        %p181 = scmp.lt.s32.totalorder %s11, 1
        %s182 = scalar_select %p181, %s11, 1
        %s183 = smul.addr %s182, 2
        %s184 = scalar_lea.vmem %s0, %s183
      $region36: #{reference_encoder_forward.7} parent=31 // pred_fallthru
        _
    $region32: #{reference_encoder_forward.7} parent=5 // pred_fallthru
      _
    %p185 = scmp.le.s32.totalorder 1, %s11
    %p186 = scmp.lt.s32.totalorder %s11, 3
    %p187 = pnand %p185, %p186
    %p188 = pneg %p187
    // Predicated region
    $region37: #{reference_encoder_forward.7} parent=5 // pred_check
      _
    $region38: #{reference_encoder_forward.7} parent=5 // pred_check_branch
      %190 = sbr.rel (%p187) target = $region40
    $region39: #{reference_encoder_forward.7} parent=5 // pred_region
      %s191 = ssub.s32 %s11, 1
      %p192 = scmp.lt.s32.totalorder %s16, 1
      %s193 = scalar_select %p192, %s16, 1
      %s194 = smul.addr %s193, 2
      %s195 = scalar_lea.vmem %s0, %s194
      %p196 = pneg %p37
      %p197 = pneg %p34
      %p198 = pneg %p58
      %p199 = pneg %p55
      %p200 = pneg %p79
      %p201 = pneg %p76
      %p202 = pneg %p100
      %p203 = pneg %p97
      %p204 = pneg %p121
      %p205 = pneg %p118
      %p206 = pneg %p147
      %p207 = pneg %p144
      %p208 = scmp.lt.s32.totalorder %s16, 1
      %s209 = scalar_select %p208, %s16, 1
      %s210 = scalar_lea.vmem %s5, %s209
      %p211 = scmp.lt.s32.totalorder %s16, 1
      %s212 = scalar_select %p211, %s16, 1
      %s213 = smul.addr %s212, 2
      %s214 = scalar_lea.vmem %s0, %s213
      %p215 = scmp.lt.s32.totalorder %s16, 1
      %s216 = scalar_select %p215, %s16, 1
      %s217 = scalar_lea.vmem %s5, %s216
      %v219 = vld [vmem:[%s214] sm:$0x3]
      %v220 = vld [vmem:[%s1] sm:$0xf]
      %v221 = vld [vmem:[%s1 + $0x4] sm:$0xf]
      %v222 = vld [vmem:[%s1 + $0x8] sm:$0xf]
      %v223 = vld [vmem:[%s2] sm:$0xf]
      %v224 = vld [vmem:[%s2 + $0x4] sm:$0xf]
      %v225 = vld [vmem:[%s2 + $0x8] sm:$0xf]
      %227 = vst [vmem:[#allocation1] ss:$4 sm:$0xff] %v219
      %v228 = vld.sshfl [vmem:[#allocation1] sm:$0xff pattern:$0x73625140]
      %230 = vrot.lane.b32.xlu0 %v228, 104
      %v231 = vpop.permute.xlu0 %230
      %v235 = vunpack.c.l.b16 %v223
      %v236 = vunpack.c.l.b16 %v224
      %v237 = vunpack.c.l.b16 %v225
      %v238 = vpack.c.b16 %v236, %v235
      %v239 = vpack.c.b16 %v237, %v237
      %vm241 = vcmask 195584
      %v243 = vsel %vm241, %v231, 0
      %vm245 = vcmask 1043456
      %v247 = vsel %vm245, %v239, 0
      %249 = vmatpush.bf16.msra.mxu0 0
      %250 = vmatpush.bf16.msra.mxu0 0
      %251 = vmatpush.bf16.msra.mxu0 0
      %252 = vmatpush.bf16.msra.mxu0 0
      %253 = vmatpush.bf16.msra.mxu0 0
      %254 = vmatpush.bf16.msra.mxu0 0
      %255 = vmatpush.bf16.msra.mxu0 %v247
      %256 = vmatpush.bf16.msra.mxu0 %v238
      %257 = vmatmul.bf16.gmra.mxu0 %v243
      %v258 = vpop.f32.mrf.mxu0
      %v259 = vadd.f32 0.0, %v258
      %v260 = vpop.f32.mrf.mxu0
      %261 = vdwg.mxu0
      %v265 = vunpack.c.l.b16 %v220
      %v266 = vunpack.c.l.b16 %v221
      %v267 = vunpack.c.l.b16 %v222
      %v268 = vpack.c.b16 %v266, %v265
      %v269 = vpack.c.b16 %v267, %v267
      %v271 = vsel %vm241, %v219, 0
      %v274 = vsel %vm245, %v269, 0
      %276 = vmatpush.bf16.msra.mxu0 0
      %277 = vmatpush.bf16.msra.mxu0 0
      %278 = vmatpush.bf16.msra.mxu0 0
      %279 = vmatpush.bf16.msra.mxu0 0
      %280 = vmatpush.bf16.msra.mxu0 0
      %281 = vmatpush.bf16.msra.mxu0 0
      %282 = vmatpush.bf16.msra.mxu0 %v274
      %283 = vmatpush.bf16.msra.mxu0 %v268
      %284 = vmatmul.bf16.gmra.mxu0 %v271
      %v285 = vpop.f32.mrf.mxu0
      %v286 = vadd.f32 %v259, %v285
      %v287 = vpop.f32.mrf.mxu0
      %288 = vdwg.mxu0
      %v289 = vld [vmem:[%s3] sm:$0xf]
      %v290 = vld [vmem:[%s3 + $0x4] sm:$0xf]
      %v291 = vld [vmem:[%s3 + $0x8] sm:$0xf]
      %292 = vst [vmem:[#allocation1] ss:$4 sm:$0xff] %v219
      %v293 = vld.sshfl [vmem:[#allocation1] sm:$0xff pattern:$0x73625140]
      %v294 = vshrl.u32 %v293, 16
      %v296 = vshll.u32 %v293, 16
      %v298 = vrot.slane %v296, 1
      %v299 = vor.u32 %v294, %v298
      %v303 = vunpack.c.l.b16 %v289
      %v304 = vunpack.c.l.b16 %v290
      %v305 = vunpack.c.l.b16 %v291
      %v306 = vpack.c.b16 %v304, %v303
      %v307 = vpack.c.b16 %v305, %v305
      %v310 = vsel %vm241, %v299, 0
      %v313 = vsel %vm245, %v307, 0
      %315 = vmatpush.bf16.msra.mxu0 0
      %316 = vmatpush.bf16.msra.mxu0 0
      %317 = vmatpush.bf16.msra.mxu0 0
      %318 = vmatpush.bf16.msra.mxu0 0
      %319 = vmatpush.bf16.msra.mxu0 0
      %320 = vmatpush.bf16.msra.mxu0 0
      %321 = vmatpush.bf16.msra.mxu0 %v313
      %322 = vmatpush.bf16.msra.mxu0 %v306
      %323 = vmatmul.bf16.gmra.mxu0 %v310
      %v324 = vpop.f32.mrf.mxu0
      %v325 = vadd.f32 0.0, %v324
      %v326 = vpop.f32.mrf.mxu0
      %327 = vdwg.mxu0
      %v328 = vadd.f32 %v286, %v325
      %v329 = vld [vmem:[%s4] sm:$0x1]
      %v331 = vperm.slane %v329, 0
      %v333 = vadd.f32 %v328, %v331
      %v334 = vmax.f32 %v333, 0.0
      %v335 = vpack.c.bf16 %v334, %v334
      %vm336 = vcmask 122880
      %337 = vst.msk [vmem:[%s217] sm:$0x1] %vm336, %v335
      %p338 = scmp.lt.s32.totalorder %s16, 1
      %s339 = scalar_select %p338, %s16, 1
      %s340 = scalar_lea.vmem %s5, %s339
      // Predicated region
      $region41: #{reference_encoder_forward.7} parent=39 // pred_check
        %p341 = pneg %p144
      $region42: #{reference_encoder_forward.7} parent=39 // pred_check_branch
        %343 = sbr.rel (%p341) target = $region44
      $region43: #{reference_encoder_forward.7} parent=39 // pred_region
        _
      $region44: #{reference_encoder_forward.7} parent=39 // pred_fallthru
        _
    $region40: #{reference_encoder_forward.7} parent=5 // pred_fallthru
      _
    %p344 = scmp.le.s32.totalorder 2, %s11
    // Predicated region
    $region45: #{reference_encoder_forward.7} parent=5 // pred_check
      %p345 = pneg %p344
    $region46: #{reference_encoder_forward.7} parent=5 // pred_check_branch
      %347 = sbr.rel (%p345) target = $region48
    $region47: #{reference_encoder_forward.7} parent=5 // pred_region
      %s348 = ssub.s32 %s11, 2
      // Predicated region
      $region49: #{reference_encoder_forward.7} parent=47 // pred_check
        %p349 = pneg %p150
      $region50: #{reference_encoder_forward.7} parent=47 // pred_check_branch
        %351 = sbr.rel (%p349) target = $region52
      $region51: #{reference_encoder_forward.7} parent=47 // pred_region
        %p352 = scmp.lt.s32.totalorder %s17, 1
        %s353 = scalar_select %p352, %s17, 1
        %s354 = scalar_lea.vmem %s5, %s353
      $region52: #{reference_encoder_forward.7} parent=47 // pred_fallthru
        _
    $region48: #{reference_encoder_forward.7} parent=5 // pred_fallthru
      _
  $region6: #{reference_encoder_forward.7} parent=0 // loop_footer
    %s15 = sadd.s32 1, %s11
  $region7: #{reference_encoder_forward.7} parent=0 // loop_footer_branch
    %10 = sbr.rel target = $region3
  $region8: #{reference_encoder_forward.7} parent=0 // loop_exit
    _

// kernel: reference_encoder_forward.9
$region0: #{reference_encoder_forward.9}
  #allocation0 [shape = 'u32[]', space=smem, size = 0x4, offset = 0x4, fixed_abs, tag = 'smem constant byte address 0x4 - core index']
  #allocation1 [shape = 'u32[72,128]{1,0:T(1,128)}', space=vmem, size = 0x9000, scoped, tag = 'internal scratch']
  #allocation2 [shape = 'f32[2,32]{1,0:T(2,128)}', space=vmem, size = 0x400, scoped, tag = 'scratch operand']
  %s0 = inlined_call_operand.vmem [shape: bf16[2,2,96], index: 0, kind: input, shape index: {}]
  %s1 = inlined_call_operand.vmem [shape: f32[32,96], index: 1, kind: input, shape index: {}]
  %s2 = inlined_call_operand.vmem [shape: f32[1,96], index: 2, kind: input, shape index: {}]
  %s3 = inlined_call_operand.hbm [shape: f32[2,32], index: 3, kind: output, shape index: {}]
  %s4 = sld [smem:[#allocation0]]
  $region34: #{reference_encoder_forward.9} parent=0
    _
  %s6 = ssub.s32 1, %s4
  %s7 = scalar_select 0, %s6, %s4
  $region1: #{reference_encoder_forward.9} parent=0
    #allocation3 [shape = 'u8[1024]{0}', space=vmem, size = 0x400, scoped, tag = 'output window, operand 0, single buffered']
    #allocation4 [shape = 's32[1]{0}', space=sflag, size = 0x4, scoped, tag = 'scoped memory for reference_encoder_forward.9']
    %8 = vsyncpa [#allocation4], 0
    // Predicated region
    $region2: #{reference_encoder_forward.9} parent=1 // pred_check
      _
    $region3: #{reference_encoder_forward.9} parent=1 // pred_check_branch
      %10 = sbr.rel (0) target = $region5
    $region4: #{reference_encoder_forward.9} parent=1 // pred_region
      _
    $region5: #{reference_encoder_forward.9} parent=1 // pred_fallthru
      _
    // Predicated region
    $region6: #{reference_encoder_forward.9} parent=1 // pred_check
      _
    $region7: #{reference_encoder_forward.9} parent=1 // pred_check_branch
      %12 = sbr.rel (0) target = $region9
    $region8: #{reference_encoder_forward.9} parent=1 // pred_region
      _
    $region9: #{reference_encoder_forward.9} parent=1 // pred_fallthru
      _
    // Predicated region
    $region10: #{reference_encoder_forward.9} parent=1 // pred_check
      _
    $region11: #{reference_encoder_forward.9} parent=1 // pred_check_branch
      %14 = sbr.rel (0) target = $region13
    $region12: #{reference_encoder_forward.9} parent=1 // pred_region
      _
    $region13: #{reference_encoder_forward.9} parent=1 // pred_fallthru
      _
    %p15 = scmp.eq.s32.totalorder 0, 0
    // Predicated region
    $region14: #{reference_encoder_forward.9} parent=1 // pred_check
      %p16 = pneg %p15
    $region15: #{reference_encoder_forward.9} parent=1 // pred_check_branch
      %18 = sbr.rel (%p16) target = $region17
    $region16: #{reference_encoder_forward.9} parent=1 // pred_region
      %vm19 = vcmask 254976
      %20 = vst.msk [vmem:[#allocation2] sm:$0x3] %vm19, 0.0
    $region17: #{reference_encoder_forward.9} parent=1 // pred_fallthru
      _
    %v21 = vld [vmem:[%s1] sm:$0xff]
    %v22 = vld [vmem:[%s1 + $0x8] sm:$0xff]
    %v23 = vld [vmem:[%s1 + $0x10] sm:$0xff]
    %v24 = vld [vmem:[%s1 + $0x18] sm:$0xff]
    %v25 = vld [vmem:[%s2] sm:$0x1]
    %p26 = scmp.ne.s32.totalorder 0, 0
    // Predicated region
    $region18: #{reference_encoder_forward.9} parent=1 // pred_check
      %p27 = pneg %p26
    $region19: #{reference_encoder_forward.9} parent=1 // pred_check_branch
      %29 = sbr.rel (%p27) target = $region21
    $region20: #{reference_encoder_forward.9} parent=1 // pred_region
      %v30 = vld [vmem:[#allocation2] sm:$0x3]
      %v31 = vld [vmem:[%s0] sm:$0x1]
      %v32 = vunpack.c.l.bf16 %v31
      %v34 = vperm.slane %v25, 0
      %vm36 = vcmask 261120
      %v38 = vsel %vm36, %v30, 0
      %40 = vmatpush.msra.mxu0 0.0
      %41 = vmatpush.msra.mxu0 0.0
      %42 = vmatpush.msra.mxu0 0.0
      %43 = vmatpush.msra.mxu0 0.0
      %44 = vmatpush.msra.mxu0 0.0
      %45 = vmatpush.msra.mxu0 0.0
      %46 = vmatpush.msra.mxu0 0.0
      %47 = vmatpush.msra.mxu0 0.0
      %48 = vmatpush.msra.mxu0 0.0
      %49 = vmatpush.msra.mxu0 0.0
      %50 = vmatpush.msra.mxu0 0.0
      %51 = vmatpush.msra.mxu0 0.0
      %52 = vmatpush.msra.mxu0 %v24
      %53 = vmatpush.msra.mxu0 %v23
      %54 = vmatpush.msra.mxu0 %v22
      %55 = vmatpush.msra.mxu0 %v21
      %56 = vmatmul.f32.gmra.mxu0 %v38
      %v57 = vpop.f32.mrf.mxu0
      %v58 = vadd.f32 %v34, %v57
      %59 = vdwg.mxu0
      %v60 = vadd.f32 %v32, %v58
      %v61 = vxor.u32 %v60, 2147483648
      %v62 = vmul.f32 %v61, 1.442695
      %v63 = vpow.pop %v62
      %v64 = vadd.f32 %v63, 1.0
      %v65 = vrcp.pop %v64
      %v66 = vmul.f32 %v64, %v65
      %v67 = vsub.f32 1.0, %v66
      %v68 = vmul.f32 %v65, %v67
      %v69 = vadd.f32 %v65, %v68
      %vm70 = vweird.f32 %v64
      %vm71 = vweird.f32 %v65
      %vm72 = vmor %vm70, %vm71
      %v73 = vsel %vm72, %v65, %v69
      %v74 = vand.u32 2147483647, %v64
      %vm75 = vcmp.eq.f32.partialorder %v74, 8.507059e+37
      %v76 = vand.u32 %v64, 2147483648
      %v77 = vor.u32 1.1754944e-38, %v76
      %v78 = vsel %vm75, %v77, %v73
      %v79 = vmul.f32 1.0, %v78
      %81 = vrot.lane.b32.xlu0 %v58, 64
      %v82 = vpop.permute.xlu0 %81
      %v84 = vmul.f32 %v79, %v82
      %86 = vrot.lane.b32.xlu0 %v84, 64
      %v87 = vpop.permute.xlu0 %86
      %v89 = vadd.f32 %v32, %v87
      %v90 = vtanh.pop %v89
      %v91 = vsub.f32 1.0, %v79
      %93 = vrot.lane.b32.xlu0 %v90, 96
      %v94 = vpop.permute.xlu0 %93
      %v96 = vmul.f32 %v91, %v94
      %97 = vrot.lane.b32.xlu0 %v30, 32
      %v98 = vpop.permute.xlu0 %97
      %v100 = vmul.f32 %v79, %v98
      %v101 = vadd.f32 %v96, %v100
      %s102 = scalar_lea.vmem %s0, 1
      %v103 = vld [vmem:[%s102] sm:$0x1]
      %v104 = vunpack.c.l.bf16 %v103
      %106 = vst [vmem:[#allocation1] ss:$4 sm:$0xff] %v101
      %v107 = vld.sshfl [vmem:[#allocation1] sm:$0xff pattern:$0x73625140]
      %108 = vrot.lane.b32.xlu0 %v107, 96
      %v109 = vpop.permute.xlu0 %108
      %v110 = vsel %vm36, %v109, 0
      %112 = vmatpush.msra.mxu0 0.0
      %113 = vmatpush.msra.mxu0 0.0
      %114 = vmatpush.msra.mxu0 0.0
      %115 = vmatpush.msra.mxu0 0.0
      %116 = vmatpush.msra.mxu0 0.0
      %117 = vmatpush.msra.mxu0 0.0
      %118 = vmatpush.msra.mxu0 0.0
      %119 = vmatpush.msra.mxu0 0.0
      %120 = vmatpush.msra.mxu0 0.0
      %121 = vmatpush.msra.mxu0 0.0
      %122 = vmatpush.msra.mxu0 0.0
      %123 = vmatpush.msra.mxu0 0.0
      %124 = vmatpush.msra.mxu0 %v24
      %125 = vmatpush.msra.mxu0 %v23
      %126 = vmatpush.msra.mxu0 %v22
      %127 = vmatpush.msra.mxu0 %v21
      %128 = vmatmul.f32.gmra.mxu0 %v110
      %v129 = vpop.f32.mrf.mxu0
      %v130 = vadd.f32 %v34, %v129
      %131 = vdwg.mxu0
      %v132 = vadd.f32 %v104, %v130
      %v133 = vxor.u32 %v132, 2147483648
      %v134 = vmul.f32 %v133, 1.442695
      %v135 = vpow.pop %v134
      %v136 = vadd.f32 %v135, 1.0
      %v137 = vrcp.pop %v136
      %v138 = vmul.f32 %v136, %v137
      %v139 = vsub.f32 1.0, %v138
      %v140 = vmul.f32 %v137, %v139
      %v141 = vadd.f32 %v137, %v140
      %vm142 = vweird.f32 %v136
      %vm143 = vweird.f32 %v137
      %vm144 = vmor %vm142, %vm143
      %v145 = vsel %vm144, %v137, %v141
      %v146 = vand.u32 2147483647, %v136
      %vm147 = vcmp.eq.f32.partialorder %v146, 8.507059e+37
      %v148 = vand.u32 %v136, 2147483648
      %v149 = vor.u32 1.1754944e-38, %v148
      %v150 = vsel %vm147, %v149, %v145
      %v151 = vmul.f32 1.0, %v150
      %153 = vrot.lane.b32.xlu0 %v130, 64
      %v154 = vpop.permute.xlu0 %153
      %v156 = vmul.f32 %v151, %v154
      %158 = vrot.lane.b32.xlu0 %v156, 64
      %v159 = vpop.permute.xlu0 %158
      %v161 = vadd.f32 %v104, %v159
      %v162 = vtanh.pop %v161
      %v163 = vsub.f32 1.0, %v151
      %165 = vrot.lane.b32.xlu0 %v162, 96
      %v166 = vpop.permute.xlu0 %165
      %v168 = vmul.f32 %v163, %v166
      %v169 = vmul.f32 %v151, %v101
      %v170 = vadd.f32 %v168, %v169
      %172 = vst [vmem:[#allocation1] ss:$4 sm:$0xff] %v170
      %v173 = vld.sshfl [vmem:[#allocation1] sm:$0xff pattern:$0x73625140]
      %174 = vrot.lane.b32.xlu0 %v173, 96
      %v175 = vpop.permute.xlu0 %174
      %vm177 = vcmask 254976
      %178 = vst.msk [vmem:[#allocation2] sm:$0x3] %vm177, %v175
    $region21: #{reference_encoder_forward.9} parent=1 // pred_fallthru
      _
    // Predicated region
    $region22: #{reference_encoder_forward.9} parent=1 // pred_check
      %p179 = pneg %p15
    $region23: #{reference_encoder_forward.9} parent=1 // pred_check_branch
      %181 = sbr.rel (%p179) target = $region25
    $region24: #{reference_encoder_forward.9} parent=1 // pred_region
      %v182 = vld [vmem:[#allocation2] sm:$0x3]
      %v183 = vld [vmem:[%s0] sm:$0x1]
      %v184 = vunpack.c.l.bf16 %v183
      %v186 = vperm.slane %v25, 0
      %vm188 = vcmask 261120
      %v190 = vsel %vm188, %v182, 0
      %192 = vmatpush.msra.mxu0 0.0
      %193 = vmatpush.msra.mxu0 0.0
      %194 = vmatpush.msra.mxu0 0.0
      %195 = vmatpush.msra.mxu0 0.0
      %196 = vmatpush.msra.mxu0 0.0
      %197 = vmatpush.msra.mxu0 0.0
      %198 = vmatpush.msra.mxu0 0.0
      %199 = vmatpush.msra.mxu0 0.0
      %200 = vmatpush.msra.mxu0 0.0
      %201 = vmatpush.msra.mxu0 0.0
      %202 = vmatpush.msra.mxu0 0.0
      %203 = vmatpush.msra.mxu0 0.0
      %204 = vmatpush.msra.mxu0 %v24
      %205 = vmatpush.msra.mxu0 %v23
      %206 = vmatpush.msra.mxu0 %v22
      %207 = vmatpush.msra.mxu0 %v21
      %208 = vmatmul.f32.gmra.mxu0 %v190
      %v209 = vpop.f32.mrf.mxu0
      %v210 = vadd.f32 %v186, %v209
      %211 = vdwg.mxu0
      %v212 = vadd.f32 %v184, %v210
      %v213 = vxor.u32 %v212, 2147483648
      %v214 = vmul.f32 %v213, 1.442695
      %v215 = vpow.pop %v214
      %v216 = vadd.f32 %v215, 1.0
      %v217 = vrcp.pop %v216
      %v218 = vmul.f32 %v216, %v217
      %v219 = vsub.f32 1.0, %v218
      %v220 = vmul.f32 %v217, %v219
      %v221 = vadd.f32 %v217, %v220
      %vm222 = vweird.f32 %v216
      %vm223 = vweird.f32 %v217
      %vm224 = vmor %vm222, %vm223
      %v225 = vsel %vm224, %v217, %v221
      %v226 = vand.u32 2147483647, %v216
      %vm227 = vcmp.eq.f32.partialorder %v226, 8.507059e+37
      %v228 = vand.u32 %v216, 2147483648
      %v229 = vor.u32 1.1754944e-38, %v228
      %v230 = vsel %vm227, %v229, %v225
      %v231 = vmul.f32 1.0, %v230
      %233 = vrot.lane.b32.xlu0 %v210, 64
      %v234 = vpop.permute.xlu0 %233
      %v236 = vmul.f32 %v231, %v234
      %238 = vrot.lane.b32.xlu0 %v236, 64
      %v239 = vpop.permute.xlu0 %238
      %v241 = vadd.f32 %v184, %v239
      %v242 = vtanh.pop %v241
      %v243 = vsub.f32 1.0, %v231
      %245 = vrot.lane.b32.xlu0 %v242, 96
      %v246 = vpop.permute.xlu0 %245
      %v248 = vmul.f32 %v243, %v246
      %249 = vrot.lane.b32.xlu0 %v182, 32
      %v250 = vpop.permute.xlu0 %249
      %v252 = vmul.f32 %v231, %v250
      %v253 = vadd.f32 %v248, %v252
      %s254 = scalar_lea.vmem %s0, 1
      %v255 = vld [vmem:[%s254] sm:$0x1]
      %v256 = vunpack.c.l.bf16 %v255
      %258 = vst [vmem:[#allocation1] ss:$4 sm:$0xff] %v253
      %v259 = vld.sshfl [vmem:[#allocation1] sm:$0xff pattern:$0x73625140]
      %260 = vrot.lane.b32.xlu0 %v259, 96
      %v261 = vpop.permute.xlu0 %260
      %v262 = vsel %vm188, %v261, 0
      %264 = vmatpush.msra.mxu0 0.0
      %265 = vmatpush.msra.mxu0 0.0
      %266 = vmatpush.msra.mxu0 0.0
      %267 = vmatpush.msra.mxu0 0.0
      %268 = vmatpush.msra.mxu0 0.0
      %269 = vmatpush.msra.mxu0 0.0
      %270 = vmatpush.msra.mxu0 0.0
      %271 = vmatpush.msra.mxu0 0.0
      %272 = vmatpush.msra.mxu0 0.0
      %273 = vmatpush.msra.mxu0 0.0
      %274 = vmatpush.msra.mxu0 0.0
      %275 = vmatpush.msra.mxu0 0.0
      %276 = vmatpush.msra.mxu0 %v24
      %277 = vmatpush.msra.mxu0 %v23
      %278 = vmatpush.msra.mxu0 %v22
      %279 = vmatpush.msra.mxu0 %v21
      %280 = vmatmul.f32.gmra.mxu0 %v262
      %v281 = vpop.f32.mrf.mxu0
      %v282 = vadd.f32 %v186, %v281
      %283 = vdwg.mxu0
      %v284 = vadd.f32 %v256, %v282
      %v285 = vxor.u32 %v284, 2147483648
      %v286 = vmul.f32 %v285, 1.442695
      %v287 = vpow.pop %v286
      %v288 = vadd.f32 %v287, 1.0
      %v289 = vrcp.pop %v288
      %v290 = vmul.f32 %v288, %v289
      %v291 = vsub.f32 1.0, %v290
      %v292 = vmul.f32 %v289, %v291
      %v293 = vadd.f32 %v289, %v292
      %vm294 = vweird.f32 %v288
      %vm295 = vweird.f32 %v289
      %vm296 = vmor %vm294, %vm295
      %v297 = vsel %vm296, %v289, %v293
      %v298 = vand.u32 2147483647, %v288
      %vm299 = vcmp.eq.f32.partialorder %v298, 8.507059e+37
      %v300 = vand.u32 %v288, 2147483648
      %v301 = vor.u32 1.1754944e-38, %v300
      %v302 = vsel %vm299, %v301, %v297
      %v303 = vmul.f32 1.0, %v302
      %305 = vrot.lane.b32.xlu0 %v282, 64
      %v306 = vpop.permute.xlu0 %305
      %v308 = vmul.f32 %v303, %v306
      %310 = vrot.lane.b32.xlu0 %v308, 64
      %v311 = vpop.permute.xlu0 %310
      %v313 = vadd.f32 %v256, %v311
      %v314 = vtanh.pop %v313
      %v315 = vsub.f32 1.0, %v303
      %317 = vrot.lane.b32.xlu0 %v314, 96
      %v318 = vpop.permute.xlu0 %317
      %v320 = vmul.f32 %v315, %v318
      %v321 = vmul.f32 %v303, %v253
      %v322 = vadd.f32 %v320, %v321
      %324 = vst [vmem:[#allocation1] ss:$4 sm:$0xff] %v322
      %v325 = vld.sshfl [vmem:[#allocation1] sm:$0xff pattern:$0x73625140]
      %326 = vrot.lane.b32.xlu0 %v325, 96
      %v327 = vpop.permute.xlu0 %326
      %vm329 = vcmask 254976
      %330 = vst.msk [vmem:[#allocation2] sm:$0x3] %vm329, %v327
      %v331 = vld [vmem:[#allocation2] sm:$0x3]
      %332 = vst.msk [vmem:[#allocation3] sm:$0x3] %vm329, %v331
    $region25: #{reference_encoder_forward.9} parent=1 // pred_fallthru
      _
    // Predicated region
    $region26: #{reference_encoder_forward.9} parent=1 // pred_check
      _
    $region27: #{reference_encoder_forward.9} parent=1 // pred_check_branch
      %334 = sbr.rel (0) target = $region29
    $region28: #{reference_encoder_forward.9} parent=1 // pred_region
      %336 = vsyncadd [#allocation4], 0
      %s338 = sshll.u32 [#allocation3], 4
      %s339 = int_to_ptr.vmem [resolvable:$true] %s338
      %s340 = sshll.u32 %s3, 4
      %s341 = int_to_ptr.hbm [resolvable:$true] %s340
      %343 = dma.vmem_to_hbm [thread:$0]  %s339, 32, %s341, [#allocation4]
    $region29: #{reference_encoder_forward.9} parent=1 // pred_fallthru
      _
    // Predicated region
    $region30: #{reference_encoder_forward.9} parent=1 // pred_check
      _
    $region31: #{reference_encoder_forward.9} parent=1 // pred_check_branch
      %345 = sbr.rel (0) target = $region33
    $region32: #{reference_encoder_forward.9} parent=1 // pred_region
      %347 = dma.done [#allocation4], 32
    $region33: #{reference_encoder_forward.9} parent=1 // pred_fallthru
      _
    %348 = vsyncpa [#allocation4], 1

</llo_original>
